<compile_context>
chip_gen: v7x
topology: tpu7x:2x2x1
jax: 0.10.0
libtpu: 0.0.40
codegen_flags: <defaults>
</compile_context>

<pallas_src>
import functools

import jax
import jax.numpy as jnp
from jax.experimental import pallas as pl
from jax.experimental.pallas import tpu as pltpu

_VMEM_LIMIT = 32 * 1024 * 1024


def _round_up(x, m):
    return (x + m - 1) // m * m


# ----------------------------------------------------- fused matmul + BN(+res) ---
def _make_fused_kernel(relu, with_res):
    if with_res:
        def kernel(a_ref, b_ref, s_ref, t_ref, r_ref, o_ref):
            acc = jnp.dot(a_ref[...], b_ref[...],
                          preferred_element_type=jnp.float32)
            y = acc * s_ref[...] + t_ref[...] + r_ref[...].astype(jnp.float32)
            if relu:
                y = jnp.maximum(y, 0.0)
            o_ref[...] = y.astype(o_ref.dtype)
    else:
        def kernel(a_ref, b_ref, s_ref, t_ref, o_ref):
            acc = jnp.dot(a_ref[...], b_ref[...],
                          preferred_element_type=jnp.float32)
            y = acc * s_ref[...] + t_ref[...]
            if relu:
                y = jnp.maximum(y, 0.0)
            o_ref[...] = y.astype(o_ref.dtype)
    return kernel


@functools.lru_cache(maxsize=None)
def _fused_matmul_call(Mp, K, Nc, tm, tn, relu, with_res, out_dtype):
    kernel = _make_fused_kernel(relu, with_res)
    in_specs = [
        pl.BlockSpec((tm, K), lambda i, j: (i, 0)),   # A (activations / patches)
        pl.BlockSpec((K, tn), lambda i, j: (0, j)),   # B (weights)
        pl.BlockSpec((1, tn), lambda i, j: (0, j)),   # BN scale
        pl.BlockSpec((1, tn), lambda i, j: (0, j)),   # BN bias
    ]
    if with_res:
        in_specs.append(pl.BlockSpec((tm, tn), lambda i, j: (i, j)))  # residual
    f = pl.pallas_call(
        kernel,
        out_shape=jax.ShapeDtypeStruct((Mp, Nc), out_dtype),
        grid=(Mp // tm, Nc // tn),
        in_specs=in_specs,
        out_specs=pl.BlockSpec((tm, tn), lambda i, j: (i, j)),
        compiler_params=pltpu.CompilerParams(
            dimension_semantics=("parallel", "parallel"),
            vmem_limit_bytes=_VMEM_LIMIT),
    )
    return jax.jit(f)


def _pick_tiles(M, K, Nc):
    # N tile: lane-dense 256 when Cout is a multiple of 256, otherwise full Cout.
    tn = Nc if Nc <= 256 else 256
    assert Nc % tn == 0
    # M tile: biggest of {1024, 512, 256} keeping one bf16 A block under ~2.5 MiB.
    tm = 128
    for cand in (1024, 512, 256):
        if cand * K * 2 <= 2_500_000:
            tm = cand
            break
    tm = min(tm, _round_up(M, 128))
    Mp = _round_up(M, tm)
    return tm, tn, Mp


def matmul_bn_act(a, b, scale, bias, *, relu, residual=None,
                  out_dtype=jnp.bfloat16):
    """out = act((a @ b) * scale + bias [+ residual]); a,b bf16, f32 accumulation."""
    M, K = a.shape
    K2, Nc = b.shape
    assert K == K2 and K % 128 == 0
    tm, tn, Mp = _pick_tiles(M, K, Nc)
    if Mp != M:
        a = jnp.pad(a, ((0, Mp - M), (0, 0)))
        if residual is not None:
            residual = jnp.pad(residual, ((0, Mp - M), (0, 0)))
    s2 = scale.reshape(1, Nc).astype(jnp.float32)
    t2 = bias.reshape(1, Nc).astype(jnp.float32)
    call = _fused_matmul_call(Mp, K, Nc, tm, tn, bool(relu),
                              residual is not None, out_dtype)
    args = (a, b, s2, t2) + ((residual,) if residual is not None else ())
    out = call(*args)
    return out[:M] if Mp != M else out


# --------------------------------------------------------- conv = im2col + fused --
def conv_bn_act(x, w2, kh, kw, stride, padding, scale, bias, *,
                relu, residual=None, out_dtype=jnp.bfloat16):
    """x: (N,H,W,Cin) bf16; w2: (Kp, Cout) bf16 pre-reshaped/padded at init."""
    N, H, W, Cin = x.shape
    Kp = w2.shape[0]
    K = kh * kw * Cin
    OH = (H + 2 * padding - kh) // stride + 1
    OW = (W + 2 * padding - kw) // stride + 1
    M = N * OH * OW
    if kh == 1 and kw == 1:
        xs = x if stride == 1 else x[:, ::stride, ::stride, :]
        a = xs.reshape(M, Cin)
        if Kp != Cin:
            a = jnp.pad(a, ((0, 0), (0, Kp - Cin)))
    else:
        # TODO(synk): stream the kh*kw taps through the matmul K axis instead of
        # materializing the im2col patches array in HBM.
        xp = x
        if padding > 0:
            xp = jnp.pad(x, ((0, 0), (padding, padding),
                             (padding, padding), (0, 0)))
        taps = [xp[:, i:i + stride * (OH - 1) + 1:stride,
                   j:j + stride * (OW - 1) + 1:stride, :]
                for i in range(kh) for j in range(kw)]
        if Kp != K:
            taps.append(jnp.zeros((N, OH, OW, Kp - K), jnp.bfloat16))
        a = jnp.concatenate(taps, axis=-1).reshape(M, Kp)
    r2 = residual.reshape(M, -1) if residual is not None else None
    y = matmul_bn_act(a, w2, scale, bias, relu=relu, residual=r2,
                      out_dtype=out_dtype)
    return y.reshape(N, OH, OW, -1)


# ------------------------------------------------------------------- max pool ----
def _maxpool9_kernel(*refs):
    o_ref = refs[-1]
    m = refs[0][...]
    for r in refs[1:-1]:
        m = jnp.maximum(m, r[...])
    o_ref[...] = m


@functools.lru_cache(maxsize=None)
def _maxpool_call(Mp, C, tm):
    f = pl.pallas_call(
        _maxpool9_kernel,
        out_shape=jax.ShapeDtypeStruct((Mp, C), jnp.bfloat16),
        grid=(Mp // tm,),
        in_specs=[pl.BlockSpec((tm, C), lambda i: (i, 0)) for _ in range(9)],
        out_specs=pl.BlockSpec((tm, C), lambda i: (i, 0)),
        compiler_params=pltpu.CompilerParams(
            dimension_semantics=("parallel",),
            vmem_limit_bytes=_VMEM_LIMIT),
    )
    return jax.jit(f)


def maxpool_3x3_s2(x):
    N, H, W, C = x.shape
    OH = (H + 2 - 3) // 2 + 1
    OW = (W + 2 - 3) // 2 + 1
    M = N * OH * OW
    xp = jnp.pad(x, ((0, 0), (1, 1), (1, 1), (0, 0)),
                 constant_values=-jnp.inf)
    slabs = [xp[:, i:i + 2 * (OH - 1) + 1:2,
                j:j + 2 * (OW - 1) + 1:2, :].reshape(M, C)
             for i in range(3) for j in range(3)]
    tm = min(512, _round_up(M, 128))
    Mp = _round_up(M, tm)
    if Mp != M:
        slabs = [jnp.pad(s, ((0, Mp - M), (0, 0))) for s in slabs]
    out = _maxpool_call(Mp, C, tm)(*slabs)
    if Mp != M:
        out = out[:M]
    return out.reshape(N, OH, OW, C)


# ------------------------------------------------------------- global avg pool ---
def _make_avgpool_kernel(inv_hw):
    def kernel(x_ref, o_ref):
        @pl.when(pl.program_id(0) == 0)
        def _():
            o_ref[...] = jnp.zeros_like(o_ref)

        o_ref[...] += jnp.sum(x_ref[...].astype(jnp.float32), axis=1)

        @pl.when(pl.program_id(0) == pl.num_programs(0) - 1)
        def _():
            o_ref[...] = o_ref[...] * inv_hw
    return kernel


@functools.lru_cache(maxsize=None)
def _avgpool_call(N, HWp, C, thw, hw_true):
    kernel = _make_avgpool_kernel(1.0 / float(hw_true))
    f = pl.pallas_call(
        kernel,
        out_shape=jax.ShapeDtypeStruct((N, C), jnp.float32),
        grid=(HWp // thw,),
        in_specs=[pl.BlockSpec((N, thw, C), lambda i: (0, i, 0))],
        out_specs=pl.BlockSpec((N, C), lambda i: (0, 0)),
        compiler_params=pltpu.CompilerParams(
            dimension_semantics=("arbitrary",),
            vmem_limit_bytes=_VMEM_LIMIT),
    )
    return jax.jit(f)


def global_avgpool(x):
    N, H, W, C = x.shape
    HW = H * W
    x3 = x.reshape(N, HW, C)
    thw = min(512, _round_up(HW, 8))
    HWp = _round_up(HW, thw)
    if HWp != HW:
        x3 = jnp.pad(x3, ((0, 0), (0, HWp - HW), (0, 0)))
    return _avgpool_call(N, HWp, C, thw, HW)(x3)       # (N, C) f32


# ---------------------------------------------------------------- parameters -----
def _bn_fold(c):
    # Inference-mode BatchNorm folded to per-channel scale/bias (f32).
    # PyTorch deterministic init: gamma=1, beta=0, running_mean=0, running_var=1.
    eps = 1e-5
    gamma = jnp.ones((c,), jnp.float32)
    beta = jnp.zeros((c,), jnp.float32)
    mean = jnp.zeros((c,), jnp.float32)
    var = jnp.ones((c,), jnp.float32)
    scale = gamma / jnp.sqrt(var + eps)
    bias = beta - mean * scale
    return scale, bias


def _conv_w(key, kh, kw, cin, cout):
    # kaiming_normal_, a=0, mode='fan_in'; reshaped to (K, Cout), K padded to 128
    # multiple with zero rows, cast to bf16 -- all done once at init.
    fan_in = kh * kw * cin
    std = (2.0 / fan_in) ** 0.5
    w = std * jax.random.normal(key, (kh, kw, cin, cout), jnp.float32)
    w2 = w.reshape(kh * kw * cin, cout)
    K = kh * kw * cin
    Kp = _round_up(K, 128)
    if Kp != K:
        w2 = jnp.pad(w2, ((0, Kp - K), (0, 0)))
    return w2.astype(jnp.bfloat16)


def init_resnet50_params(key, n_class=200):
    keys = iter(jax.random.split(key, 256))
    params = {"stem_w": _conv_w(next(keys), 7, 7, 3, 64)}
    params["stem_scale"], params["stem_bias"] = _bn_fold(64)

    cfg = [(64, 3, 1), (128, 4, 2), (256, 6, 2), (512, 3, 2)]   # resnet50
    inplanes = 64
    blocks = []
    arch = []
    for planes, nblocks, stride in cfg:
        for b in range(nblocks):
            s = stride if b == 0 else 1
            has_down = (s != 1 or inplanes != planes * 4)
            blk = {"w1": _conv_w(next(keys), 1, 1, inplanes, planes),
                   "w2": _conv_w(next(keys), 3, 3, planes, planes),
                   "w3": _conv_w(next(keys), 1, 1, planes, planes * 4)}
            blk["s1"], blk["b1"] = _bn_fold(planes)
            blk["s2"], blk["b2"] = _bn_fold(planes)
            blk["s3"], blk["b3"] = _bn_fold(planes * 4)
            if has_down:
                blk["wd"] = _conv_w(next(keys), 1, 1, inplanes, planes * 4)
                blk["sd"], blk["bd"] = _bn_fold(planes * 4)
            blocks.append(blk)
            arch.append((s, has_down))
            inplanes = planes * 4
    params["blocks"] = blocks

    feat_dim = 512 * 4
    fc_w = (2.0 / feat_dim) ** 0.5 * jax.random.normal(
        next(keys), (feat_dim, n_class), jnp.float32)            # kaiming_normal_
    params["fc_w"] = fc_w.astype(jnp.bfloat16)
    bound = 1.0 / feat_dim ** 0.5
    params["fc_b"] = jax.random.uniform(next(keys), (n_class,), jnp.float32,
                                        -bound, bound)
    return params, tuple(arch)


# ------------------------------------------------------------------- forward -----
def _bottleneck(x, blk, stride, has_down):
    y = conv_bn_act(x, blk["w1"], 1, 1, 1, 0, blk["s1"], blk["b1"], relu=True)
    y = conv_bn_act(y, blk["w2"], 3, 3, stride, 1, blk["s2"], blk["b2"], relu=True)
    if has_down:
        identity = conv_bn_act(x, blk["wd"], 1, 1, stride, 0,
                               blk["sd"], blk["bd"], relu=False)
    else:
        identity = x
    # PyTorch Bottleneck: out = bn3(conv3(out)); out += identity; out = relu(out)
    return conv_bn_act(y, blk["w3"], 1, 1, 1, 0, blk["s3"], blk["b3"],
                       relu=True, residual=identity)


def resnet_forward(params, x_nchw, arch):
    assert x_nchw.shape[1] == 3
    x = jnp.transpose(x_nchw, (0, 2, 3, 1)).astype(jnp.bfloat16)   # NCHW -> NHWC
    x = conv_bn_act(x, params["stem_w"], 7, 7, 2, 3,
                    params["stem_scale"], params["stem_bias"], relu=True)
    x = maxpool_3x3_s2(x)
    for blk, (s, has_down) in zip(params["blocks"], arch):
        x = _bottleneck(x, blk, s, has_down)
    feat = global_avgpool(x)                                       # (N, 2048) f32
    ones = jnp.ones_like(params["fc_b"])
    logits = matmul_bn_act(feat.astype(jnp.bfloat16), params["fc_w"],
                           ones, params["fc_b"],                   # fused fc bias
                           relu=False, out_dtype=jnp.float32)
    return logits


if __name__ == "__main__":
    n_class = 200
    key = jax.random.PRNGKey(0)
    pkey, xkey = jax.random.split(key)
    params, arch = init_resnet50_params(pkey, n_class=n_class)
    # Small demo input (module's assert is 448x448; relaxed here for speed).
    x = jax.random.normal(xkey, (2, 3, 64, 64), jnp.float32)
    fwd = jax.jit(resnet_forward, static_argnums=(2,))
    out = fwd(params, x, arch)
    out = jax.block_until_ready(out)
    assert out.shape == (2, n_class)
    assert bool(jnp.all(jnp.isfinite(out)))
    print("KERNEL_OK")
</pallas_src>

<mosaic_0001>
module attributes {stable_mosaic.version = 11 : i64} {
  func.func @kernel(%arg0: i32, %arg1: i32, %arg2: memref<1024x256xbf16, #tpu.memory_space<vmem>>, %arg3: memref<256x64xbf16, #tpu.memory_space<vmem>>, %arg4: memref<1x64xf32, #tpu.memory_space<vmem>>, %arg5: memref<1x64xf32, #tpu.memory_space<vmem>>, %arg6: memref<1024x64xbf16, #tpu.memory_space<vmem>>) attributes {dimension_semantics = [#tpu.dimension_semantics<parallel>, #tpu.dimension_semantics<parallel>], iteration_bounds = array<i64: 2, 1>, scalar_prefetch = 0 : i64, scratch_operands = 0 : i64, tpu.core_type = #tpu.core_type<tc>, window_params = [{transform_indices = @transform_0, window_bounds = array<i64: 1024, 256>}, {transform_indices = @transform_1, window_bounds = array<i64: 256, 64>}, {transform_indices = @transform_2, window_bounds = array<i64: 1, 64>}, {transform_indices = @transform_3, window_bounds = array<i64: 1, 64>}, {transform_indices = @transform_4, window_bounds = array<i64: 1024, 64>}]} {
    %c0 = arith.constant 0 : index
    %c0_0 = arith.constant 0 : index
    %0 = vector.load %arg2[%c0, %c0_0] : memref<1024x256xbf16, #tpu.memory_space<vmem>>, vector<1024x256xbf16>
    %c0_1 = arith.constant 0 : index
    %c0_2 = arith.constant 0 : index
    %1 = vector.load %arg3[%c0_1, %c0_2] : memref<256x64xbf16, #tpu.memory_space<vmem>>, vector<256x64xbf16>
    %cst = arith.constant dense<0.000000e+00> : vector<1024x64xf32>
    %2 = tpu.matmul %0, %1, %cst {dimension_numbers = #tpu.dot_dimension_numbers<[1], [0], [0], [1], [0, 0, 1, 1], [], []>} : vector<1024x256xbf16>, vector<256x64xbf16>, vector<1024x64xf32> -> vector<1024x64xf32>
    %c0_3 = arith.constant 0 : index
    %c0_4 = arith.constant 0 : index
    %3 = vector.load %arg4[%c0_3, %c0_4] : memref<1x64xf32, #tpu.memory_space<vmem>>, vector<1x64xf32>
    %4 = vector.broadcast %3 : vector<1x64xf32> to vector<1024x64xf32>
    %5 = arith.mulf %2, %4 : vector<1024x64xf32>
    %c0_5 = arith.constant 0 : index
    %c0_6 = arith.constant 0 : index
    %6 = vector.load %arg5[%c0_5, %c0_6] : memref<1x64xf32, #tpu.memory_space<vmem>>, vector<1x64xf32>
    %7 = vector.broadcast %6 : vector<1x64xf32> to vector<1024x64xf32>
    %8 = arith.addf %5, %7 : vector<1024x64xf32>
    %cst_7 = arith.constant 0.000000e+00 : f32
    %9 = vector.broadcast %cst_7 : f32 to vector<1024x64xf32>
    %10 = arith.maximumf %8, %9 : vector<1024x64xf32>
    %11 = arith.truncf %10 : vector<1024x64xf32> to vector<1024x64xbf16>
    %c0_8 = arith.constant 0 : index
    %c0_9 = arith.constant 0 : index
    %12 = vector.load %arg6[%c0_8, %c0_9] : memref<1024x64xbf16, #tpu.memory_space<vmem>>, vector<1024x64xbf16>
    tpu.vector_store %arg6[%c0_8, %c0_9], %11 {strides = array<i32>} : memref<1024x64xbf16, #tpu.memory_space<vmem>>, vector<1024x64xbf16>,
    return
  }
  func.func @transform_0(%arg0: i32, %arg1: i32) -> (i32, i32) {
    %c0_i32 = arith.constant 0 : i32
    %c0_i32_0 = arith.constant 0 : i32
    return %arg0, %c0_i32 : i32, i32
  }
  func.func @transform_1(%arg0: i32, %arg1: i32) -> (i32, i32) {
    %c0_i32 = arith.constant 0 : i32
    %c0_i32_0 = arith.constant 0 : i32
    return %c0_i32, %arg1 : i32, i32
  }
  func.func @transform_2(%arg0: i32, %arg1: i32) -> (i32, i32) {
    %c0_i32 = arith.constant 0 : i32
    %c0_i32_0 = arith.constant 0 : i32
    return %c0_i32, %arg1 : i32, i32
  }
  func.func @transform_3(%arg0: i32, %arg1: i32) -> (i32, i32) {
    %c0_i32 = arith.constant 0 : i32
    %c0_i32_0 = arith.constant 0 : i32
    return %c0_i32, %arg1 : i32, i32
  }
  func.func @transform_4(%arg0: i32, %arg1: i32) -> (i32, i32) {
    %c0_i32 = arith.constant 0 : i32
    return %arg0, %arg1 : i32, i32
  }
}

</mosaic_0001>

<llo_original>
// kernel: tpu_custom_call.1
$region0: #{tpu_custom_call.1}
  #allocation0 [shape = 'u32[]', space=smem, size = 0x4, offset = 0x4, fixed_abs, tag = 'smem constant byte address 0x4 - core index']
  #allocation1 [shape = 'u32[144,128]{1,0:T(1,128)}', space=vmem, size = 0x12000, scoped, tag = 'internal scratch']
  %s0 = inlined_call_operand.hbm [shape: bf16[2048,256], index: 0, kind: input, shape index: {}]
  %s1 = inlined_call_operand.vmem [shape: bf16[256,64], index: 1, kind: input, shape index: {}]
  %s2 = inlined_call_operand.vmem [shape: f32[1,64], index: 2, kind: input, shape index: {}]
  %s3 = inlined_call_operand.vmem [shape: f32[1,64], index: 3, kind: input, shape index: {}]
  %s4 = inlined_call_operand.vmem [shape: bf16[2048,64], index: 4, kind: output, shape index: {}]
  %s5 = sld [smem:[#allocation0]]
  $region53: #{tpu_custom_call.1} parent=0
    _
  %s7 = ssub.s32 1, %s5
  %s8 = scalar_select 0, %s7, %s5
  $region1: #{tpu_custom_call.1} parent=0
    #allocation2 [shape = 'u8[1048576]{0}', space=vmem, size = 0x100000, scoped, tag = 'input window, operand 0']
    #allocation3 [shape = 's32[2]{0}', space=sflag, size = 0x8, scoped, tag = 'scoped memory for tpu_custom_call.1']
    %9 = vsyncpa [#allocation3], 0
    %s10 = scalar_lea.sflag [#allocation3], 1
    %11 = vsyncpa %s10, 0
    loop: start=0, step=1, limit=4
    $region2: #{tpu_custom_call.1} parent=1 // loop_pre_header
      _
    $region3: #{tpu_custom_call.1} parent=1 // loop_header
      %s13 = sphi 0, %s17
      %p14 = scmp.ge.s32.totalorder %s13, 4
      %s20 = sphi 0, %s32
      %s21 = sphi 0, %s28
      %s22 = sphi 0, %s20
      %s23 = sphi 0, %s21
      %s24 = sphi 0, %s22
      %s25 = sphi 0, %s23
      %s35 = sphi 0, %s37
      %s38 = sphi 0, %s35
      %s39 = sphi 0, %s38
      %s55 = sphi 0, %s39
      %s61 = sphi 0, %s63
      %s64 = sphi 0, %s61
      %s65 = sphi 0, %s64
      %s81 = sphi 0, %s65
      %s87 = sphi 0, %s89
      %s90 = sphi 0, %s87
      %s91 = sphi 0, %s90
      %s107 = sphi 0, %s91
      %s113 = sphi 0, %s115
      %s116 = sphi 0, %s113
      %s117 = sphi 0, %s116
      %s133 = sphi 0, %s117
      %s141 = sphi 0, %s143
      %s144 = sphi 0, %s141
      %s145 = sphi 0, %s144
      %s161 = sphi 0, %s145
    $region4: #{tpu_custom_call.1} parent=1 // loop_header_branch
      %16 = sbr.rel (%p14) target = $region8
    $region5: #{tpu_custom_call.1} parent=1 // loop_body
      %s18 = ssub.s32 %s13, 1
      %s19 = ssub.s32 %s13, 2
      %s26 = sadd.s32 1, %s21
      %p27 = scmp.ge.s32.totalorder %s26, 1
      %s28 = scalar_select %p27, 0, %s26
      %s29 = sadd.s32 1, %s20
      %s30 = scalar_select %p27, %s29, %s20
      %p31 = scmp.ge.s32.totalorder %s30, 2
      %s32 = scalar_select %p31, 0, %s30
      %s33 = ssub.s32 %s20, %s32
      %p34 = scmp.eq.s32.totalorder %s33, 0
      %s36 = sadd.s32 %s35, 1
      %s37 = scalar_select %p34, %s35, %s36
      %p40 = pneg %p34
      %p41 = scmp.eq.s32.totalorder %s13, 1
      %p42 = por %p40, %p41
      %p43 = scmp.ne.s32.totalorder %s35, %s38
      %p44 = scmp.eq.s32.totalorder %s13, 0
      %p45 = por %p43, %p44
      %p46 = scmp.ne.s32.totalorder %s35, %s38
      %p47 = scmp.eq.s32.totalorder %s18, 1
      %p48 = por %p46, %p47
      %p49 = scmp.ne.s32.totalorder %s38, %s39
      %p50 = scmp.eq.s32.totalorder %s18, 0
      %p51 = por %p49, %p50
      %p52 = scmp.ne.s32.totalorder %s38, %s39
      %p53 = scmp.eq.s32.totalorder %s19, 1
      %p54 = por %p52, %p53
      %p56 = scmp.ne.s32.totalorder %s39, %s55
      %p57 = scmp.eq.s32.totalorder %s19, 0
      %p58 = por %p56, %p57
      %s59 = ssub.s32 %s21, %s28
      %p60 = scmp.eq.s32.totalorder %s59, 0
      %s62 = sadd.s32 %s61, 1
      %s63 = scalar_select %p60, %s61, %s62
      %p66 = pneg %p60
      %p67 = scmp.eq.s32.totalorder %s13, 1
      %p68 = por %p66, %p67
      %p69 = scmp.ne.s32.totalorder %s61, %s64
      %p70 = scmp.eq.s32.totalorder %s13, 0
      %p71 = por %p69, %p70
      %p72 = scmp.ne.s32.totalorder %s61, %s64
      %p73 = scmp.eq.s32.totalorder %s18, 1
      %p74 = por %p72, %p73
      %p75 = scmp.ne.s32.totalorder %s64, %s65
      %p76 = scmp.eq.s32.totalorder %s18, 0
      %p77 = por %p75, %p76
      %p78 = scmp.ne.s32.totalorder %s64, %s65
      %p79 = scmp.eq.s32.totalorder %s19, 1
      %p80 = por %p78, %p79
      %p82 = scmp.ne.s32.totalorder %s65, %s81
      %p83 = scmp.eq.s32.totalorder %s19, 0
      %p84 = por %p82, %p83
      %s85 = ssub.s32 %s21, %s28
      %p86 = scmp.eq.s32.totalorder %s85, 0
      %s88 = sadd.s32 %s87, 1
      %s89 = scalar_select %p86, %s87, %s88
      %p92 = pneg %p86
      %p93 = scmp.eq.s32.totalorder %s13, 1
      %p94 = por %p92, %p93
      %p95 = scmp.ne.s32.totalorder %s87, %s90
      %p96 = scmp.eq.s32.totalorder %s13, 0
      %p97 = por %p95, %p96
      %p98 = scmp.ne.s32.totalorder %s87, %s90
      %p99 = scmp.eq.s32.totalorder %s18, 1
      %p100 = por %p98, %p99
      %p101 = scmp.ne.s32.totalorder %s90, %s91
      %p102 = scmp.eq.s32.totalorder %s18, 0
      %p103 = por %p101, %p102
      %p104 = scmp.ne.s32.totalorder %s90, %s91
      %p105 = scmp.eq.s32.totalorder %s19, 1
      %p106 = por %p104, %p105
      %p108 = scmp.ne.s32.totalorder %s91, %s107
      %p109 = scmp.eq.s32.totalorder %s19, 0
      %p110 = por %p108, %p109
      %s111 = ssub.s32 %s21, %s28
      %p112 = scmp.eq.s32.totalorder %s111, 0
      %s114 = sadd.s32 %s113, 1
      %s115 = scalar_select %p112, %s113, %s114
      %p118 = pneg %p112
      %p119 = scmp.eq.s32.totalorder %s13, 1
      %p120 = por %p118, %p119
      %p121 = scmp.ne.s32.totalorder %s113, %s116
      %p122 = scmp.eq.s32.totalorder %s13, 0
      %p123 = por %p121, %p122
      %p124 = scmp.ne.s32.totalorder %s113, %s116
      %p125 = scmp.eq.s32.totalorder %s18, 1
      %p126 = por %p124, %p125
      %p127 = scmp.ne.s32.totalorder %s116, %s117
      %p128 = scmp.eq.s32.totalorder %s18, 0
      %p129 = por %p127, %p128
      %p130 = scmp.ne.s32.totalorder %s116, %s117
      %p131 = scmp.eq.s32.totalorder %s19, 1
      %p132 = por %p130, %p131
      %p134 = scmp.ne.s32.totalorder %s117, %s133
      %p135 = scmp.eq.s32.totalorder %s19, 0
      %p136 = por %p134, %p135
      %s137 = ssub.s32 %s20, %s32
      %s138 = ssub.s32 %s21, %s28
      %s139 = sor.u32 %s137, %s138
      %p140 = scmp.eq.s32.totalorder %s139, 0
      %s142 = sadd.s32 %s141, 1
      %s143 = scalar_select %p140, %s141, %s142
      %p146 = pneg %p140
      %p147 = scmp.eq.s32.totalorder %s13, 1
      %p148 = por %p146, %p147
      %p149 = scmp.ne.s32.totalorder %s141, %s144
      %p150 = scmp.eq.s32.totalorder %s13, 0
      %p151 = por %p149, %p150
      %p152 = scmp.ne.s32.totalorder %s141, %s144
      %p153 = scmp.eq.s32.totalorder %s18, 1
      %p154 = por %p152, %p153
      %p155 = scmp.ne.s32.totalorder %s144, %s145
      %p156 = scmp.eq.s32.totalorder %s18, 0
      %p157 = por %p155, %p156
      %p158 = scmp.ne.s32.totalorder %s144, %s145
      %p159 = scmp.eq.s32.totalorder %s19, 1
      %p160 = por %p158, %p159
      %p162 = scmp.ne.s32.totalorder %s145, %s161
      %p163 = scmp.eq.s32.totalorder %s19, 0
      %p164 = por %p162, %p163
      %p165 = scmp.le.s32.totalorder 1, %s13
      %p166 = scmp.lt.s32.totalorder %s13, 3
      %p167 = pnand %p165, %p166
      %p168 = pneg %p167
      // Predicated region
      $region9: #{tpu_custom_call.1} parent=5 // pred_check
        _
      $region10: #{tpu_custom_call.1} parent=5 // pred_check_branch
        %170 = sbr.rel (%p167) target = $region12
      $region11: #{tpu_custom_call.1} parent=5 // pred_region
        %s171 = ssub.s32 %s13, 1
        // Predicated region
        $region13: #{tpu_custom_call.1} parent=11 // pred_check
          %p172 = pneg %p77
        $region14: #{tpu_custom_call.1} parent=11 // pred_check_branch
          %174 = sbr.rel (%p172) target = $region16
        $region15: #{tpu_custom_call.1} parent=11 // pred_region
          %p175 = scmp.lt.s32.totalorder %s23, 0
          %s176 = scalar_select %p175, %s23, 0
          %s177 = smul.addr %s176, 4
          %s178 = scalar_lea.vmem %s1, %s177
        $region16: #{tpu_custom_call.1} parent=11 // pred_fallthru
          _
        // Predicated region
        $region17: #{tpu_custom_call.1} parent=11 // pred_check
          %p179 = pneg %p103
        $region18: #{tpu_custom_call.1} parent=11 // pred_check_branch
          %181 = sbr.rel (%p179) target = $region20
        $region19: #{tpu_custom_call.1} parent=11 // pred_region
          %p182 = scmp.lt.s32.totalorder %s23, 0
          %s183 = scalar_select %p182, %s23, 0
          %s184 = scalar_lea.vmem %s2, %s183
        $region20: #{tpu_custom_call.1} parent=11 // pred_fallthru
          _
        // Predicated region
        $region21: #{tpu_custom_call.1} parent=11 // pred_check
          %p185 = pneg %p129
        $region22: #{tpu_custom_call.1} parent=11 // pred_check_branch
          %187 = sbr.rel (%p185) target = $region24
        $region23: #{tpu_custom_call.1} parent=11 // pred_region
          %p188 = scmp.lt.s32.totalorder %s23, 0
          %s189 = scalar_select %p188, %s23, 0
          %s190 = scalar_lea.vmem %s3, %s189
        $region24: #{tpu_custom_call.1} parent=11 // pred_fallthru
          _
      $region12: #{tpu_custom_call.1} parent=5 // pred_fallthru
        _
      %p191 = scmp.lt.s32.totalorder %s13, 2
      // Predicated region
      $region25: #{tpu_custom_call.1} parent=5 // pred_check
        %p192 = pneg %p191
      $region26: #{tpu_custom_call.1} parent=5 // pred_check_branch
        %194 = sbr.rel (%p192) target = $region28
      $region27: #{tpu_custom_call.1} parent=5 // pred_region
        // Predicated region
        $region29: #{tpu_custom_call.1} parent=27 // pred_check
          %p195 = pneg %p45
        $region30: #{tpu_custom_call.1} parent=27 // pred_check_branch
          %197 = sbr.rel (%p195) target = $region32
        $region31: #{tpu_custom_call.1} parent=27 // pred_region
          %s198 = sand.u32 %s35, 1
          %s199 = scalar_lea.sflag [#allocation3], %s198
          %s200 = sand.u32 %s35, 1
          %s201 = smul.addr %s200, 1024
          %s202 = scalar_lea.vmem [#allocation2], %s201
          %s203 = smul.u32 128, %s20
          %s205 = ssub.s32 16384, 16384
          %206 = vsyncadd %s199, %s205
          %s207 = smul.addr %s203, 2
          %s208 = smul.addr %s207, 64
          %s209 = scalar_lea.hbm %s0, %s208
          %s210 = sshll.u32 %s202, 4
          %s211 = int_to_ptr.vmem [resolvable:$true] %s210
          %216 = dma.hbm_to_vmem [thread:$0]  %s209, 16384, %s211, %s199, 128, 128, 8
        $region32: #{tpu_custom_call.1} parent=27 // pred_fallthru
          _
      $region28: #{tpu_custom_call.1} parent=5 // pred_fallthru
        _
      %p217 = scmp.le.s32.totalorder 1, %s13
      %p218 = scmp.lt.s32.totalorder %s13, 3
      %p219 = pnand %p217, %p218
      %p220 = pneg %p219
      // Predicated region
      $region33: #{tpu_custom_call.1} parent=5 // pred_check
        _
      $region34: #{tpu_custom_call.1} parent=5 // pred_check_branch
        %222 = sbr.rel (%p219) target = $region36
      $region35: #{tpu_custom_call.1} parent=5 // pred_region
        %s223 = ssub.s32 %s13, 1
        %s224 = sand.u32 %s38, 1
        %s225 = scalar_lea.sflag [#allocation3], %s224
        %s226 = sand.u32 %s38, 1
        %s227 = smul.addr %s226, 1024
        %s228 = scalar_lea.vmem [#allocation2], %s227
        // Predicated region
        $region37: #{tpu_custom_call.1} parent=35 // pred_check
          %p229 = pneg %p51
        $region38: #{tpu_custom_call.1} parent=35 // pred_check_branch
          %231 = sbr.rel (%p229) target = $region40
        $region39: #{tpu_custom_call.1} parent=35 // pred_region
          %232 = dma.done %s225, 16384
        $region40: #{tpu_custom_call.1} parent=35 // pred_fallthru
          _
        %s233 = sand.u32 %s38, 1
        %s234 = scalar_lea.sflag [#allocation3], %s233
        %s235 = sand.u32 %s38, 1
        %s236 = smul.addr %s235, 1024
        %s237 = scalar_lea.vmem [#allocation2], %s236
        %p238 = pneg %p51
        %p239 = pneg %p48
        %p240 = scmp.lt.s32.totalorder %s23, 0
        %s241 = scalar_select %p240, %s23, 0
        %s242 = smul.addr %s241, 4
        %s243 = scalar_lea.vmem %s1, %s242
        %p244 = pneg %p77
        %p245 = pneg %p74
        %p246 = scmp.lt.s32.totalorder %s23, 0
        %s247 = scalar_select %p246, %s23, 0
        %s248 = scalar_lea.vmem %s2, %s247
        %p249 = pneg %p103
        %p250 = pneg %p100
        %p251 = scmp.lt.s32.totalorder %s23, 0
        %s252 = scalar_select %p251, %s23, 0
        %s253 = scalar_lea.vmem %s3, %s252
        %p254 = pneg %p129
        %p255 = pneg %p126
        %p256 = pneg %p157
        %p257 = pneg %p154
        %s258 = smul.u32 128, %s22
        %p259 = scmp.lt.s32.totalorder %s258, 255
        %s260 = scalar_select %p259, %s258, 255
        %p261 = scmp.lt.s32.totalorder %s23, 0
        %s262 = scalar_select %p261, %s23, 0
        %s263 = sadd.s32 %s262, %s260
        %s264 = smul.addr %s263, 4
        %s265 = scalar_lea.vmem %s4, %s264
        %s266 = smul.u32 128, %s22
        %p267 = scmp.lt.s32.totalorder %s23, 0
        %s268 = scalar_select %p267, %s23, 0
        %s269 = smul.addr %s268, 4
        %s270 = scalar_lea.vmem %s1, %s269
        %p271 = scmp.lt.s32.totalorder %s23, 0
        %s272 = scalar_select %p271, %s23, 0
        %s273 = scalar_lea.vmem %s2, %s272
        %p274 = scmp.lt.s32.totalorder %s23, 0
        %s275 = scalar_select %p274, %s23, 0
        %s276 = scalar_lea.vmem %s3, %s275
        %s277 = smul.u32 128, %s22
        %p278 = scmp.lt.s32.totalorder %s277, 255
        %s279 = scalar_select %p278, %s277, 255
        %p280 = scmp.lt.s32.totalorder %s23, 0
        %s281 = scalar_select %p280, %s23, 0
        %s282 = sadd.s32 %s281, %s279
        %s283 = smul.addr %s282, 4
        %s284 = scalar_lea.vmem %s4, %s283
        %s285 = smul.u32 128, %s22
        %v287 = vld [vmem:[%s228] sm:$0xff]
        %v288 = vld [vmem:[%s228 + $0x8] sm:$0xff]
        %v289 = vld [vmem:[%s228 + $0x10] sm:$0xff]
        %v290 = vld [vmem:[%s228 + $0x18] sm:$0xff]
        %v291 = vld [vmem:[%s228 + $0x20] sm:$0xff]
        %v292 = vld [vmem:[%s228 + $0x28] sm:$0xff]
        %v293 = vld [vmem:[%s228 + $0x30] sm:$0xff]
        %v294 = vld [vmem:[%s228 + $0x38] sm:$0xff]
        %v295 = vld [vmem:[%s228 + $0x40] sm:$0xff]
        %v296 = vld [vmem:[%s228 + $0x48] sm:$0xff]
        %v297 = vld [vmem:[%s228 + $0x50] sm:$0xff]
        %v298 = vld [vmem:[%s228 + $0x58] sm:$0xff]
        %v299 = vld [vmem:[%s228 + $0x60] sm:$0xff]
        %v300 = vld [vmem:[%s228 + $0x68] sm:$0xff]
        %v301 = vld [vmem:[%s228 + $0x70] sm:$0xff]
        %v302 = vld [vmem:[%s228 + $0x78] sm:$0xff]
        %v303 = vld [vmem:[%s228 + $0x80] sm:$0xff]
        %v304 = vld [vmem:[%s228 + $0x88] sm:$0xff]
        %v305 = vld [vmem:[%s228 + $0x90] sm:$0xff]
        %v306 = vld [vmem:[%s228 + $0x98] sm:$0xff]
        %v307 = vld [vmem:[%s228 + $0xa0] sm:$0xff]
        %v308 = vld [vmem:[%s228 + $0xa8] sm:$0xff]
        %v309 = vld [vmem:[%s228 + $0xb0] sm:$0xff]
        %v310 = vld [vmem:[%s228 + $0xb8] sm:$0xff]
        %v311 = vld [vmem:[%s228 + $0xc0] sm:$0xff]
        %v312 = vld [vmem:[%s228 + $0xc8] sm:$0xff]
        %v313 = vld [vmem:[%s228 + $0xd0] sm:$0xff]
        %v314 = vld [vmem:[%s228 + $0xd8] sm:$0xff]
        %v315 = vld [vmem:[%s228 + $0xe0] sm:$0xff]
        %v316 = vld [vmem:[%s228 + $0xe8] sm:$0xff]
        %v317 = vld [vmem:[%s228 + $0xf0] sm:$0xff]
        %v318 = vld [vmem:[%s228 + $0xf8] sm:$0xff]
        %v319 = vld [vmem:[%s228 + $0x100] sm:$0xff]
        %v320 = vld [vmem:[%s228 + $0x108] sm:$0xff]
        %v321 = vld [vmem:[%s228 + $0x110] sm:$0xff]
        %v322 = vld [vmem:[%s228 + $0x118] sm:$0xff]
        %v323 = vld [vmem:[%s228 + $0x120] sm:$0xff]
        %v324 = vld [vmem:[%s228 + $0x128] sm:$0xff]
        %v325 = vld [vmem:[%s228 + $0x130] sm:$0xff]
        %v326 = vld [vmem:[%s228 + $0x138] sm:$0xff]
        %v327 = vld [vmem:[%s228 + $0x140] sm:$0xff]
        %v328 = vld [vmem:[%s228 + $0x148] sm:$0xff]
        %v329 = vld [vmem:[%s228 + $0x150] sm:$0xff]
        %v330 = vld [vmem:[%s228 + $0x158] sm:$0xff]
        %v331 = vld [vmem:[%s228 + $0x160] sm:$0xff]
        %v332 = vld [vmem:[%s228 + $0x168] sm:$0xff]
        %v333 = vld [vmem:[%s228 + $0x170] sm:$0xff]
        %v334 = vld [vmem:[%s228 + $0x178] sm:$0xff]
        %v335 = vld [vmem:[%s228 + $0x180] sm:$0xff]
        %v336 = vld [vmem:[%s228 + $0x188] sm:$0xff]
        %v337 = vld [vmem:[%s228 + $0x190] sm:$0xff]
        %v338 = vld [vmem:[%s228 + $0x198] sm:$0xff]
        %v339 = vld [vmem:[%s228 + $0x1a0] sm:$0xff]
        %v340 = vld [vmem:[%s228 + $0x1a8] sm:$0xff]
        %v341 = vld [vmem:[%s228 + $0x1b0] sm:$0xff]
        %v342 = vld [vmem:[%s228 + $0x1b8] sm:$0xff]
        %v343 = vld [vmem:[%s228 + $0x1c0] sm:$0xff]
        %v344 = vld [vmem:[%s228 + $0x1c8] sm:$0xff]
        %v345 = vld [vmem:[%s228 + $0x1d0] sm:$0xff]
        %v346 = vld [vmem:[%s228 + $0x1d8] sm:$0xff]
        %v347 = vld [vmem:[%s228 + $0x1e0] sm:$0xff]
        %v348 = vld [vmem:[%s228 + $0x1e8] sm:$0xff]
        %v349 = vld [vmem:[%s228 + $0x1f0] sm:$0xff]
        %v350 = vld [vmem:[%s228 + $0x1f8] sm:$0xff]
        %v351 = vld [vmem:[%s228 + $0x200] sm:$0xff]
        %v352 = vld [vmem:[%s228 + $0x208] sm:$0xff]
        %v353 = vld [vmem:[%s228 + $0x210] sm:$0xff]
        %v354 = vld [vmem:[%s228 + $0x218] sm:$0xff]
        %v355 = vld [vmem:[%s228 + $0x220] sm:$0xff]
        %v356 = vld [vmem:[%s228 + $0x228] sm:$0xff]
        %v357 = vld [vmem:[%s228 + $0x230] sm:$0xff]
        %v358 = vld [vmem:[%s228 + $0x238] sm:$0xff]
        %v359 = vld [vmem:[%s228 + $0x240] sm:$0xff]
        %v360 = vld [vmem:[%s228 + $0x248] sm:$0xff]
        %v361 = vld [vmem:[%s228 + $0x250] sm:$0xff]
        %v362 = vld [vmem:[%s228 + $0x258] sm:$0xff]
        %v363 = vld [vmem:[%s228 + $0x260] sm:$0xff]
        %v364 = vld [vmem:[%s228 + $0x268] sm:$0xff]
        %v365 = vld [vmem:[%s228 + $0x270] sm:$0xff]
        %v366 = vld [vmem:[%s228 + $0x278] sm:$0xff]
        %v367 = vld [vmem:[%s228 + $0x280] sm:$0xff]
        %v368 = vld [vmem:[%s228 + $0x288] sm:$0xff]
        %v369 = vld [vmem:[%s228 + $0x290] sm:$0xff]
        %v370 = vld [vmem:[%s228 + $0x298] sm:$0xff]
        %v371 = vld [vmem:[%s228 + $0x2a0] sm:$0xff]
        %v372 = vld [vmem:[%s228 + $0x2a8] sm:$0xff]
        %v373 = vld [vmem:[%s228 + $0x2b0] sm:$0xff]
        %v374 = vld [vmem:[%s228 + $0x2b8] sm:$0xff]
        %v375 = vld [vmem:[%s228 + $0x2c0] sm:$0xff]
        %v376 = vld [vmem:[%s228 + $0x2c8] sm:$0xff]
        %v377 = vld [vmem:[%s228 + $0x2d0] sm:$0xff]
        %v378 = vld [vmem:[%s228 + $0x2d8] sm:$0xff]
        %v379 = vld [vmem:[%s228 + $0x2e0] sm:$0xff]
        %v380 = vld [vmem:[%s228 + $0x2e8] sm:$0xff]
        %v381 = vld [vmem:[%s228 + $0x2f0] sm:$0xff]
        %v382 = vld [vmem:[%s228 + $0x2f8] sm:$0xff]
        %v383 = vld [vmem:[%s228 + $0x300] sm:$0xff]
        %v384 = vld [vmem:[%s228 + $0x308] sm:$0xff]
        %v385 = vld [vmem:[%s228 + $0x310] sm:$0xff]
        %v386 = vld [vmem:[%s228 + $0x318] sm:$0xff]
        %v387 = vld [vmem:[%s228 + $0x320] sm:$0xff]
        %v388 = vld [vmem:[%s228 + $0x328] sm:$0xff]
        %v389 = vld [vmem:[%s228 + $0x330] sm:$0xff]
        %v390 = vld [vmem:[%s228 + $0x338] sm:$0xff]
        %v391 = vld [vmem:[%s228 + $0x340] sm:$0xff]
        %v392 = vld [vmem:[%s228 + $0x348] sm:$0xff]
        %v393 = vld [vmem:[%s228 + $0x350] sm:$0xff]
        %v394 = vld [vmem:[%s228 + $0x358] sm:$0xff]
        %v395 = vld [vmem:[%s228 + $0x360] sm:$0xff]
        %v396 = vld [vmem:[%s228 + $0x368] sm:$0xff]
        %v397 = vld [vmem:[%s228 + $0x370] sm:$0xff]
        %v398 = vld [vmem:[%s228 + $0x378] sm:$0xff]
        %v399 = vld [vmem:[%s228 + $0x380] sm:$0xff]
        %v400 = vld [vmem:[%s228 + $0x388] sm:$0xff]
        %v401 = vld [vmem:[%s228 + $0x390] sm:$0xff]
        %v402 = vld [vmem:[%s228 + $0x398] sm:$0xff]
        %v403 = vld [vmem:[%s228 + $0x3a0] sm:$0xff]
        %v404 = vld [vmem:[%s228 + $0x3a8] sm:$0xff]
        %v405 = vld [vmem:[%s228 + $0x3b0] sm:$0xff]
        %v406 = vld [vmem:[%s228 + $0x3b8] sm:$0xff]
        %v407 = vld [vmem:[%s228 + $0x3c0] sm:$0xff]
        %v408 = vld [vmem:[%s228 + $0x3c8] sm:$0xff]
        %v409 = vld [vmem:[%s228 + $0x3d0] sm:$0xff]
        %v410 = vld [vmem:[%s228 + $0x3d8] sm:$0xff]
        %v411 = vld [vmem:[%s228 + $0x3e0] sm:$0xff]
        %v412 = vld [vmem:[%s228 + $0x3e8] sm:$0xff]
        %v413 = vld [vmem:[%s228 + $0x3f0] sm:$0xff]
        %v414 = vld [vmem:[%s228 + $0x3f8] sm:$0xff]
        %v415 = vld [vmem:[%s270] sm:$0xf]
        %v416 = vld [vmem:[%s270 + $0x4] sm:$0xf]
        %v417 = vld [vmem:[%s270 + $0x8] sm:$0xf]
        %v418 = vld [vmem:[%s270 + $0xc] sm:$0xf]
        %v419 = vld [vmem:[%s270 + $0x10] sm:$0xf]
        %v420 = vld [vmem:[%s270 + $0x14] sm:$0xf]
        %v421 = vld [vmem:[%s270 + $0x18] sm:$0xf]
        %v422 = vld [vmem:[%s270 + $0x1c] sm:$0xf]
        %v423 = vld [vmem:[%s270 + $0x20] sm:$0xf]
        %v424 = vld [vmem:[%s270 + $0x24] sm:$0xf]
        %v425 = vld [vmem:[%s270 + $0x28] sm:$0xf]
        %v426 = vld [vmem:[%s270 + $0x2c] sm:$0xf]
        %v427 = vld [vmem:[%s270 + $0x30] sm:$0xf]
        %v428 = vld [vmem:[%s270 + $0x34] sm:$0xf]
        %v429 = vld [vmem:[%s270 + $0x38] sm:$0xf]
        %v430 = vld [vmem:[%s270 + $0x3c] sm:$0xf]
        %v431 = vld [vmem:[%s270 + $0x40] sm:$0xf]
        %v432 = vld [vmem:[%s270 + $0x44] sm:$0xf]
        %v433 = vld [vmem:[%s270 + $0x48] sm:$0xf]
        %v434 = vld [vmem:[%s270 + $0x4c] sm:$0xf]
        %v435 = vld [vmem:[%s270 + $0x50] sm:$0xf]
        %v436 = vld [vmem:[%s270 + $0x54] sm:$0xf]
        %v437 = vld [vmem:[%s270 + $0x58] sm:$0xf]
        %v438 = vld [vmem:[%s270 + $0x5c] sm:$0xf]
        %v439 = vld [vmem:[%s270 + $0x60] sm:$0xf]
        %v440 = vld [vmem:[%s270 + $0x64] sm:$0xf]
        %v441 = vld [vmem:[%s270 + $0x68] sm:$0xf]
        %v442 = vld [vmem:[%s270 + $0x6c] sm:$0xf]
        %v443 = vld [vmem:[%s270 + $0x70] sm:$0xf]
        %v444 = vld [vmem:[%s270 + $0x74] sm:$0xf]
        %v445 = vld [vmem:[%s270 + $0x78] sm:$0xf]
        %v446 = vld [vmem:[%s270 + $0x7c] sm:$0xf]
        %v575 = vunpack.c.l.b16 %v287
        %v576 = vunpack.c.h.b16 %v287
        %v577 = vunpack.c.l.b16 %v288
        %v578 = vunpack.c.h.b16 %v288
        %v579 = vunpack.c.l.b16 %v289
        %v580 = vunpack.c.h.b16 %v289
        %v581 = vunpack.c.l.b16 %v290
        %v582 = vunpack.c.h.b16 %v290
        %v583 = vunpack.c.l.b16 %v291
        %v584 = vunpack.c.h.b16 %v291
        %v585 = vunpack.c.l.b16 %v292
        %v586 = vunpack.c.h.b16 %v292
        %v587 = vunpack.c.l.b16 %v293
        %v588 = vunpack.c.h.b16 %v293
        %v589 = vunpack.c.l.b16 %v294
        %v590 = vunpack.c.h.b16 %v294
        %v591 = vunpack.c.l.b16 %v295
        %v592 = vunpack.c.h.b16 %v295
        %v593 = vunpack.c.l.b16 %v296
        %v594 = vunpack.c.h.b16 %v296
        %v595 = vunpack.c.l.b16 %v297
        %v596 = vunpack.c.h.b16 %v297
        %v597 = vunpack.c.l.b16 %v298
        %v598 = vunpack.c.h.b16 %v298
        %v599 = vunpack.c.l.b16 %v299
        %v600 = vunpack.c.h.b16 %v299
        %v601 = vunpack.c.l.b16 %v300
        %v602 = vunpack.c.h.b16 %v300
        %v603 = vunpack.c.l.b16 %v301
        %v604 = vunpack.c.h.b16 %v301
        %v605 = vunpack.c.l.b16 %v302
        %v606 = vunpack.c.h.b16 %v302
        %v607 = vunpack.c.l.b16 %v303
        %v608 = vunpack.c.h.b16 %v303
        %v609 = vunpack.c.l.b16 %v304
        %v610 = vunpack.c.h.b16 %v304
        %v611 = vunpack.c.l.b16 %v305
        %v612 = vunpack.c.h.b16 %v305
        %v613 = vunpack.c.l.b16 %v306
        %v614 = vunpack.c.h.b16 %v306
        %v615 = vunpack.c.l.b16 %v307
        %v616 = vunpack.c.h.b16 %v307
        %v617 = vunpack.c.l.b16 %v308
        %v618 = vunpack.c.h.b16 %v308
        %v619 = vunpack.c.l.b16 %v309
        %v620 = vunpack.c.h.b16 %v309
        %v621 = vunpack.c.l.b16 %v310
        %v622 = vunpack.c.h.b16 %v310
        %v623 = vunpack.c.l.b16 %v311
        %v624 = vunpack.c.h.b16 %v311
        %v625 = vunpack.c.l.b16 %v312
        %v626 = vunpack.c.h.b16 %v312
        %v627 = vunpack.c.l.b16 %v313
        %v628 = vunpack.c.h.b16 %v313
        %v629 = vunpack.c.l.b16 %v314
        %v630 = vunpack.c.h.b16 %v314
        %v631 = vunpack.c.l.b16 %v315
        %v632 = vunpack.c.h.b16 %v315
        %v633 = vunpack.c.l.b16 %v316
        %v634 = vunpack.c.h.b16 %v316
        %v635 = vunpack.c.l.b16 %v317
        %v636 = vunpack.c.h.b16 %v317
        %v637 = vunpack.c.l.b16 %v318
        %v638 = vunpack.c.h.b16 %v318
        %v639 = vunpack.c.l.b16 %v319
        %v640 = vunpack.c.h.b16 %v319
        %v641 = vunpack.c.l.b16 %v320
        %v642 = vunpack.c.h.b16 %v320
        %v643 = vunpack.c.l.b16 %v321
        %v644 = vunpack.c.h.b16 %v321
        %v645 = vunpack.c.l.b16 %v322
        %v646 = vunpack.c.h.b16 %v322
        %v647 = vunpack.c.l.b16 %v323
        %v648 = vunpack.c.h.b16 %v323
        %v649 = vunpack.c.l.b16 %v324
        %v650 = vunpack.c.h.b16 %v324
        %v651 = vunpack.c.l.b16 %v325
        %v652 = vunpack.c.h.b16 %v325
        %v653 = vunpack.c.l.b16 %v326
        %v654 = vunpack.c.h.b16 %v326
        %v655 = vunpack.c.l.b16 %v327
        %v656 = vunpack.c.h.b16 %v327
        %v657 = vunpack.c.l.b16 %v328
        %v658 = vunpack.c.h.b16 %v328
        %v659 = vunpack.c.l.b16 %v329
        %v660 = vunpack.c.h.b16 %v329
        %v661 = vunpack.c.l.b16 %v330
        %v662 = vunpack.c.h.b16 %v330
        %v663 = vunpack.c.l.b16 %v331
        %v664 = vunpack.c.h.b16 %v331
        %v665 = vunpack.c.l.b16 %v332
        %v666 = vunpack.c.h.b16 %v332
        %v667 = vunpack.c.l.b16 %v333
        %v668 = vunpack.c.h.b16 %v333
        %v669 = vunpack.c.l.b16 %v334
        %v670 = vunpack.c.h.b16 %v334
        %v671 = vunpack.c.l.b16 %v335
        %v672 = vunpack.c.h.b16 %v335
        %v673 = vunpack.c.l.b16 %v336
        %v674 = vunpack.c.h.b16 %v336
        %v675 = vunpack.c.l.b16 %v337
        %v676 = vunpack.c.h.b16 %v337
        %v677 = vunpack.c.l.b16 %v338
        %v678 = vunpack.c.h.b16 %v338
        %v679 = vunpack.c.l.b16 %v339
        %v680 = vunpack.c.h.b16 %v339
        %v681 = vunpack.c.l.b16 %v340
        %v682 = vunpack.c.h.b16 %v340
        %v683 = vunpack.c.l.b16 %v341
        %v684 = vunpack.c.h.b16 %v341
        %v685 = vunpack.c.l.b16 %v342
        %v686 = vunpack.c.h.b16 %v342
        %v687 = vunpack.c.l.b16 %v343
        %v688 = vunpack.c.h.b16 %v343
        %v689 = vunpack.c.l.b16 %v344
        %v690 = vunpack.c.h.b16 %v344
        %v691 = vunpack.c.l.b16 %v345
        %v692 = vunpack.c.h.b16 %v345
        %v693 = vunpack.c.l.b16 %v346
        %v694 = vunpack.c.h.b16 %v346
        %v695 = vunpack.c.l.b16 %v347
        %v696 = vunpack.c.h.b16 %v347
        %v697 = vunpack.c.l.b16 %v348
        %v698 = vunpack.c.h.b16 %v348
        %v699 = vunpack.c.l.b16 %v349
        %v700 = vunpack.c.h.b16 %v349
        %v701 = vunpack.c.l.b16 %v350
        %v702 = vunpack.c.h.b16 %v350
        %v703 = vunpack.c.l.b16 %v351
        %v704 = vunpack.c.h.b16 %v351
        %v705 = vunpack.c.l.b16 %v352
        %v706 = vunpack.c.h.b16 %v352
        %v707 = vunpack.c.l.b16 %v353
        %v708 = vunpack.c.h.b16 %v353
        %v709 = vunpack.c.l.b16 %v354
        %v710 = vunpack.c.h.b16 %v354
        %v711 = vunpack.c.l.b16 %v355
        %v712 = vunpack.c.h.b16 %v355
        %v713 = vunpack.c.l.b16 %v356
        %v714 = vunpack.c.h.b16 %v356
        %v715 = vunpack.c.l.b16 %v357
        %v716 = vunpack.c.h.b16 %v357
        %v717 = vunpack.c.l.b16 %v358
        %v718 = vunpack.c.h.b16 %v358
        %v719 = vunpack.c.l.b16 %v359
        %v720 = vunpack.c.h.b16 %v359
        %v721 = vunpack.c.l.b16 %v360
        %v722 = vunpack.c.h.b16 %v360
        %v723 = vunpack.c.l.b16 %v361
        %v724 = vunpack.c.h.b16 %v361
        %v725 = vunpack.c.l.b16 %v362
        %v726 = vunpack.c.h.b16 %v362
        %v727 = vunpack.c.l.b16 %v363
        %v728 = vunpack.c.h.b16 %v363
        %v729 = vunpack.c.l.b16 %v364
        %v730 = vunpack.c.h.b16 %v364
        %v731 = vunpack.c.l.b16 %v365
        %v732 = vunpack.c.h.b16 %v365
        %v733 = vunpack.c.l.b16 %v366
        %v734 = vunpack.c.h.b16 %v366
        %v735 = vunpack.c.l.b16 %v367
        %v736 = vunpack.c.h.b16 %v367
        %v737 = vunpack.c.l.b16 %v368
        %v738 = vunpack.c.h.b16 %v368
        %v739 = vunpack.c.l.b16 %v369
        %v740 = vunpack.c.h.b16 %v369
        %v741 = vunpack.c.l.b16 %v370
        %v742 = vunpack.c.h.b16 %v370
        %v743 = vunpack.c.l.b16 %v371
        %v744 = vunpack.c.h.b16 %v371
        %v745 = vunpack.c.l.b16 %v372
        %v746 = vunpack.c.h.b16 %v372
        %v747 = vunpack.c.l.b16 %v373
        %v748 = vunpack.c.h.b16 %v373
        %v749 = vunpack.c.l.b16 %v374
        %v750 = vunpack.c.h.b16 %v374
        %v751 = vunpack.c.l.b16 %v375
        %v752 = vunpack.c.h.b16 %v375
        %v753 = vunpack.c.l.b16 %v376
        %v754 = vunpack.c.h.b16 %v376
        %v755 = vunpack.c.l.b16 %v377
        %v756 = vunpack.c.h.b16 %v377
        %v757 = vunpack.c.l.b16 %v378
        %v758 = vunpack.c.h.b16 %v378
        %v759 = vunpack.c.l.b16 %v379
        %v760 = vunpack.c.h.b16 %v379
        %v761 = vunpack.c.l.b16 %v380
        %v762 = vunpack.c.h.b16 %v380
        %v763 = vunpack.c.l.b16 %v381
        %v764 = vunpack.c.h.b16 %v381
        %v765 = vunpack.c.l.b16 %v382
        %v766 = vunpack.c.h.b16 %v382
        %v767 = vunpack.c.l.b16 %v383
        %v768 = vunpack.c.h.b16 %v383
        %v769 = vunpack.c.l.b16 %v384
        %v770 = vunpack.c.h.b16 %v384
        %v771 = vunpack.c.l.b16 %v385
        %v772 = vunpack.c.h.b16 %v385
        %v773 = vunpack.c.l.b16 %v386
        %v774 = vunpack.c.h.b16 %v386
        %v775 = vunpack.c.l.b16 %v387
        %v776 = vunpack.c.h.b16 %v387
        %v777 = vunpack.c.l.b16 %v388
        %v778 = vunpack.c.h.b16 %v388
        %v779 = vunpack.c.l.b16 %v389
        %v780 = vunpack.c.h.b16 %v389
        %v781 = vunpack.c.l.b16 %v390
        %v782 = vunpack.c.h.b16 %v390
        %v783 = vunpack.c.l.b16 %v391
        %v784 = vunpack.c.h.b16 %v391
        %v785 = vunpack.c.l.b16 %v392
        %v786 = vunpack.c.h.b16 %v392
        %v787 = vunpack.c.l.b16 %v393
        %v788 = vunpack.c.h.b16 %v393
        %v789 = vunpack.c.l.b16 %v394
        %v790 = vunpack.c.h.b16 %v394
        %v791 = vunpack.c.l.b16 %v395
        %v792 = vunpack.c.h.b16 %v395
        %v793 = vunpack.c.l.b16 %v396
        %v794 = vunpack.c.h.b16 %v396
        %v795 = vunpack.c.l.b16 %v397
        %v796 = vunpack.c.h.b16 %v397
        %v797 = vunpack.c.l.b16 %v398
        %v798 = vunpack.c.h.b16 %v398
        %v799 = vunpack.c.l.b16 %v399
        %v800 = vunpack.c.h.b16 %v399
        %v801 = vunpack.c.l.b16 %v400
        %v802 = vunpack.c.h.b16 %v400
        %v803 = vunpack.c.l.b16 %v401
        %v804 = vunpack.c.h.b16 %v401
        %v805 = vunpack.c.l.b16 %v402
        %v806 = vunpack.c.h.b16 %v402
        %v807 = vunpack.c.l.b16 %v403
        %v808 = vunpack.c.h.b16 %v403
        %v809 = vunpack.c.l.b16 %v404
        %v810 = vunpack.c.h.b16 %v404
        %v811 = vunpack.c.l.b16 %v405
        %v812 = vunpack.c.h.b16 %v405
        %v813 = vunpack.c.l.b16 %v406
        %v814 = vunpack.c.h.b16 %v406
        %v815 = vunpack.c.l.b16 %v407
        %v816 = vunpack.c.h.b16 %v407
        %v817 = vunpack.c.l.b16 %v408
        %v818 = vunpack.c.h.b16 %v408
        %v819 = vunpack.c.l.b16 %v409
        %v820 = vunpack.c.h.b16 %v409
        %v821 = vunpack.c.l.b16 %v410
        %v822 = vunpack.c.h.b16 %v410
        %v823 = vunpack.c.l.b16 %v411
        %v824 = vunpack.c.h.b16 %v411
        %v825 = vunpack.c.l.b16 %v412
        %v826 = vunpack.c.h.b16 %v412
        %v827 = vunpack.c.l.b16 %v413
        %v828 = vunpack.c.h.b16 %v413
        %v829 = vunpack.c.l.b16 %v414
        %v830 = vunpack.c.h.b16 %v414
        %v831 = vpack.c.b16 %v577, %v575
        %v832 = vpack.c.b16 %v578, %v576
        %v833 = vpack.c.b16 %v581, %v579
        %v834 = vpack.c.b16 %v582, %v580
        %v835 = vpack.c.b16 %v585, %v583
        %v836 = vpack.c.b16 %v586, %v584
        %v837 = vpack.c.b16 %v589, %v587
        %v838 = vpack.c.b16 %v590, %v588
        %v839 = vpack.c.b16 %v593, %v591
        %v840 = vpack.c.b16 %v594, %v592
        %v841 = vpack.c.b16 %v597, %v595
        %v842 = vpack.c.b16 %v598, %v596
        %v843 = vpack.c.b16 %v601, %v599
        %v844 = vpack.c.b16 %v602, %v600
        %v845 = vpack.c.b16 %v605, %v603
        %v846 = vpack.c.b16 %v606, %v604
        %v847 = vpack.c.b16 %v609, %v607
        %v848 = vpack.c.b16 %v610, %v608
        %v849 = vpack.c.b16 %v613, %v611
        %v850 = vpack.c.b16 %v614, %v612
        %v851 = vpack.c.b16 %v617, %v615
        %v852 = vpack.c.b16 %v618, %v616
        %v853 = vpack.c.b16 %v621, %v619
        %v854 = vpack.c.b16 %v622, %v620
        %v855 = vpack.c.b16 %v625, %v623
        %v856 = vpack.c.b16 %v626, %v624
        %v857 = vpack.c.b16 %v629, %v627
        %v858 = vpack.c.b16 %v630, %v628
        %v859 = vpack.c.b16 %v633, %v631
        %v860 = vpack.c.b16 %v634, %v632
        %v861 = vpack.c.b16 %v637, %v635
        %v862 = vpack.c.b16 %v638, %v636
        %v863 = vpack.c.b16 %v641, %v639
        %v864 = vpack.c.b16 %v642, %v640
        %v865 = vpack.c.b16 %v645, %v643
        %v866 = vpack.c.b16 %v646, %v644
        %v867 = vpack.c.b16 %v649, %v647
        %v868 = vpack.c.b16 %v650, %v648
        %v869 = vpack.c.b16 %v653, %v651
        %v870 = vpack.c.b16 %v654, %v652
        %v871 = vpack.c.b16 %v657, %v655
        %v872 = vpack.c.b16 %v658, %v656
        %v873 = vpack.c.b16 %v661, %v659
        %v874 = vpack.c.b16 %v662, %v660
        %v875 = vpack.c.b16 %v665, %v663
        %v876 = vpack.c.b16 %v666, %v664
        %v877 = vpack.c.b16 %v669, %v667
        %v878 = vpack.c.b16 %v670, %v668
        %v879 = vpack.c.b16 %v673, %v671
        %v880 = vpack.c.b16 %v674, %v672
        %v881 = vpack.c.b16 %v677, %v675
        %v882 = vpack.c.b16 %v678, %v676
        %v883 = vpack.c.b16 %v681, %v679
        %v884 = vpack.c.b16 %v682, %v680
        %v885 = vpack.c.b16 %v685, %v683
        %v886 = vpack.c.b16 %v686, %v684
        %v887 = vpack.c.b16 %v689, %v687
        %v888 = vpack.c.b16 %v690, %v688
        %v889 = vpack.c.b16 %v693, %v691
        %v890 = vpack.c.b16 %v694, %v692
        %v891 = vpack.c.b16 %v697, %v695
        %v892 = vpack.c.b16 %v698, %v696
        %v893 = vpack.c.b16 %v701, %v699
        %v894 = vpack.c.b16 %v702, %v700
        %v895 = vpack.c.b16 %v705, %v703
        %v896 = vpack.c.b16 %v706, %v704
        %v897 = vpack.c.b16 %v709, %v707
        %v898 = vpack.c.b16 %v710, %v708
        %v899 = vpack.c.b16 %v713, %v711
        %v900 = vpack.c.b16 %v714, %v712
        %v901 = vpack.c.b16 %v717, %v715
        %v902 = vpack.c.b16 %v718, %v716
        %v903 = vpack.c.b16 %v721, %v719
        %v904 = vpack.c.b16 %v722, %v720
        %v905 = vpack.c.b16 %v725, %v723
        %v906 = vpack.c.b16 %v726, %v724
        %v907 = vpack.c.b16 %v729, %v727
        %v908 = vpack.c.b16 %v730, %v728
        %v909 = vpack.c.b16 %v733, %v731
        %v910 = vpack.c.b16 %v734, %v732
        %v911 = vpack.c.b16 %v737, %v735
        %v912 = vpack.c.b16 %v738, %v736
        %v913 = vpack.c.b16 %v741, %v739
        %v914 = vpack.c.b16 %v742, %v740
        %v915 = vpack.c.b16 %v745, %v743
        %v916 = vpack.c.b16 %v746, %v744
        %v917 = vpack.c.b16 %v749, %v747
        %v918 = vpack.c.b16 %v750, %v748
        %v919 = vpack.c.b16 %v753, %v751
        %v920 = vpack.c.b16 %v754, %v752
        %v921 = vpack.c.b16 %v757, %v755
        %v922 = vpack.c.b16 %v758, %v756
        %v923 = vpack.c.b16 %v761, %v759
        %v924 = vpack.c.b16 %v762, %v760
        %v925 = vpack.c.b16 %v765, %v763
        %v926 = vpack.c.b16 %v766, %v764
        %v927 = vpack.c.b16 %v769, %v767
        %v928 = vpack.c.b16 %v770, %v768
        %v929 = vpack.c.b16 %v773, %v771
        %v930 = vpack.c.b16 %v774, %v772
        %v931 = vpack.c.b16 %v777, %v775
        %v932 = vpack.c.b16 %v778, %v776
        %v933 = vpack.c.b16 %v781, %v779
        %v934 = vpack.c.b16 %v782, %v780
        %v935 = vpack.c.b16 %v785, %v783
        %v936 = vpack.c.b16 %v786, %v784
        %v937 = vpack.c.b16 %v789, %v787
        %v938 = vpack.c.b16 %v790, %v788
        %v939 = vpack.c.b16 %v793, %v791
        %v940 = vpack.c.b16 %v794, %v792
        %v941 = vpack.c.b16 %v797, %v795
        %v942 = vpack.c.b16 %v798, %v796
        %v943 = vpack.c.b16 %v801, %v799
        %v944 = vpack.c.b16 %v802, %v800
        %v945 = vpack.c.b16 %v805, %v803
        %v946 = vpack.c.b16 %v806, %v804
        %v947 = vpack.c.b16 %v809, %v807
        %v948 = vpack.c.b16 %v810, %v808
        %v949 = vpack.c.b16 %v813, %v811
        %v950 = vpack.c.b16 %v814, %v812
        %v951 = vpack.c.b16 %v817, %v815
        %v952 = vpack.c.b16 %v818, %v816
        %v953 = vpack.c.b16 %v821, %v819
        %v954 = vpack.c.b16 %v822, %v820
        %v955 = vpack.c.b16 %v825, %v823
        %v956 = vpack.c.b16 %v826, %v824
        %v957 = vpack.c.b16 %v829, %v827
        %v958 = vpack.c.b16 %v830, %v828
        %v1119 = vunpack.c.l.b16 %v415
        %v1120 = vunpack.c.l.b16 %v416
        %v1121 = vunpack.c.l.b16 %v417
        %v1122 = vunpack.c.l.b16 %v418
        %v1123 = vunpack.c.l.b16 %v419
        %v1124 = vunpack.c.l.b16 %v420
        %v1125 = vunpack.c.l.b16 %v421
        %v1126 = vunpack.c.l.b16 %v422
        %v1127 = vunpack.c.l.b16 %v423
        %v1128 = vunpack.c.l.b16 %v424
        %v1129 = vunpack.c.l.b16 %v425
        %v1130 = vunpack.c.l.b16 %v426
        %v1131 = vunpack.c.l.b16 %v427
        %v1132 = vunpack.c.l.b16 %v428
        %v1133 = vunpack.c.l.b16 %v429
        %v1134 = vunpack.c.l.b16 %v430
        %v1135 = vunpack.c.l.b16 %v431
        %v1136 = vunpack.c.l.b16 %v432
        %v1137 = vunpack.c.l.b16 %v433
        %v1138 = vunpack.c.l.b16 %v434
        %v1139 = vunpack.c.l.b16 %v435
        %v1140 = vunpack.c.l.b16 %v436
        %v1141 = vunpack.c.l.b16 %v437
        %v1142 = vunpack.c.l.b16 %v438
        %v1143 = vunpack.c.l.b16 %v439
        %v1144 = vunpack.c.l.b16 %v440
        %v1145 = vunpack.c.l.b16 %v441
        %v1146 = vunpack.c.l.b16 %v442
        %v1147 = vunpack.c.l.b16 %v443
        %v1148 = vunpack.c.l.b16 %v444
        %v1149 = vunpack.c.l.b16 %v445
        %v1150 = vunpack.c.l.b16 %v446
        %v1151 = vpack.c.b16 %v1120, %v1119
        %v1152 = vpack.c.b16 %v1122, %v1121
        %v1153 = vpack.c.b16 %v1124, %v1123
        %v1154 = vpack.c.b16 %v1126, %v1125
        %v1155 = vpack.c.b16 %v1128, %v1127
        %v1156 = vpack.c.b16 %v1130, %v1129
        %v1157 = vpack.c.b16 %v1132, %v1131
        %v1158 = vpack.c.b16 %v1134, %v1133
        %v1159 = vpack.c.b16 %v1136, %v1135
        %v1160 = vpack.c.b16 %v1138, %v1137
        %v1161 = vpack.c.b16 %v1140, %v1139
        %v1162 = vpack.c.b16 %v1142, %v1141
        %v1163 = vpack.c.b16 %v1144, %v1143
        %v1164 = vpack.c.b16 %v1146, %v1145
        %v1165 = vpack.c.b16 %v1148, %v1147
        %v1166 = vpack.c.b16 %v1150, %v1149
        %1183 = vmatprep.subr.bf16.mxu0 0
        %1184 = vmatpush1.bf16.msra.mxu0 %v1151
        %1185 = vmatprep.subr.bf16.mxu0 0
        %1186 = vmatpush1.bf16.msra.mxu0 %v1152
        %1187 = vmatprep.subr.bf16.mxu0 0
        %1188 = vmatpush1.bf16.msra.mxu0 %v1153
        %1189 = vmatprep.subr.bf16.mxu0 0
        %1190 = vmatpush1.bf16.msra.mxu0 %v1154
        %1191 = vmatprep.subr.bf16.mxu0 0
        %1192 = vmatpush1.bf16.msra.mxu0 %v1155
        %1193 = vmatprep.subr.bf16.mxu0 0
        %1194 = vmatpush1.bf16.msra.mxu0 %v1156
        %1195 = vmatprep.subr.bf16.mxu0 0
        %1196 = vmatpush1.bf16.msra.mxu0 %v1157
        %1197 = vmatprep.subr.bf16.mxu0 0
        %1198 = vmatpush1.bf16.msra.mxu0 %v1158
        %1199 = vmatprep.subr.bf16.mxu0 0
        %1200 = vmatpush1.bf16.msra.mxu0 %v1159
        %1201 = vmatprep.subr.bf16.mxu0 0
        %1202 = vmatpush1.bf16.msra.mxu0 %v1160
        %1203 = vmatprep.subr.bf16.mxu0 0
        %1204 = vmatpush1.bf16.msra.mxu0 %v1161
        %1205 = vmatprep.subr.bf16.mxu0 0
        %1206 = vmatpush1.bf16.msra.mxu0 %v1162
        %1207 = vmatprep.subr.bf16.mxu0 0
        %1208 = vmatpush1.bf16.msra.mxu0 %v1163
        %1209 = vmatprep.subr.bf16.mxu0 0
        %1210 = vmatpush1.bf16.msra.mxu0 %v1164
        %1211 = vmatprep.subr.bf16.mxu0 0
        %1212 = vmatpush1.bf16.msra.mxu0 %v1165
        %1213 = vmatprep.subr.bf16.mxu0 0
        %1214 = vmatpush1.bf16.msra.mxu0 %v1166
        %1215 = vmatprep.mubr.bf16.mxu0 %v832
        %1216 = vmatmul.mubr.bf16.gmra.mrb[0].mxu0 %v831
        %v1217 = vpop.f32.mrb[0].mxu0
        %v1218 = vadd.f32 0.0, %v1217
        %v1219 = vpop.f32.mrb[0].mxu0
        %v1220 = vpop.f32.mrb[0].mxu0
        %v1221 = vadd.f32 0.0, %v1220
        %v1222 = vpop.f32.mrb[0].mxu0
        %1223 = vmatprep.mubr.bf16.mxu0 %v834
        %1224 = vmatmul.mubr.bf16.gmra.mrb[0].mxu0 %v833
        %v1225 = vpop.f32.mrb[0].mxu0
        %v1226 = vadd.f32 0.0, %v1225
        %v1227 = vpop.f32.mrb[0].mxu0
        %v1228 = vpop.f32.mrb[0].mxu0
        %v1229 = vadd.f32 0.0, %v1228
        %v1230 = vpop.f32.mrb[0].mxu0
        %1231 = vmatprep.mubr.bf16.mxu0 %v836
        %1232 = vmatmul.mubr.bf16.gmra.mrb[0].mxu0 %v835
        %v1233 = vpop.f32.mrb[0].mxu0
        %v1234 = vadd.f32 0.0, %v1233
        %v1235 = vpop.f32.mrb[0].mxu0
        %v1236 = vpop.f32.mrb[0].mxu0
        %v1237 = vadd.f32 0.0, %v1236
        %v1238 = vpop.f32.mrb[0].mxu0
        %1239 = vmatprep.mubr.bf16.mxu0 %v838
        %1240 = vmatmul.mubr.bf16.gmra.mrb[0].mxu0 %v837
        %v1241 = vpop.f32.mrb[0].mxu0
        %v1242 = vadd.f32 0.0, %v1241
        %v1243 = vpop.f32.mrb[0].mxu0
        %v1244 = vpop.f32.mrb[0].mxu0
        %v1245 = vadd.f32 0.0, %v1244
        %v1246 = vpop.f32.mrb[0].mxu0
        %1247 = vmatprep.mubr.bf16.mxu0 %v840
        %1248 = vmatmul.mubr.bf16.gmra.mrb[0].mxu0 %v839
        %v1249 = vpop.f32.mrb[0].mxu0
        %v1250 = vadd.f32 0.0, %v1249
        %v1251 = vpop.f32.mrb[0].mxu0
        %v1252 = vpop.f32.mrb[0].mxu0
        %v1253 = vadd.f32 0.0, %v1252
        %v1254 = vpop.f32.mrb[0].mxu0
        %1255 = vmatprep.mubr.bf16.mxu0 %v842
        %1256 = vmatmul.mubr.bf16.gmra.mrb[0].mxu0 %v841
        %v1257 = vpop.f32.mrb[0].mxu0
        %v1258 = vadd.f32 0.0, %v1257
        %v1259 = vpop.f32.mrb[0].mxu0
        %v1260 = vpop.f32.mrb[0].mxu0
        %v1261 = vadd.f32 0.0, %v1260
        %v1262 = vpop.f32.mrb[0].mxu0
        %1263 = vmatprep.mubr.bf16.mxu0 %v844
        %1264 = vmatmul.mubr.bf16.gmra.mrb[0].mxu0 %v843
        %v1265 = vpop.f32.mrb[0].mxu0
        %v1266 = vadd.f32 0.0, %v1265
        %v1267 = vpop.f32.mrb[0].mxu0
        %v1268 = vpop.f32.mrb[0].mxu0
        %v1269 = vadd.f32 0.0, %v1268
        %v1270 = vpop.f32.mrb[0].mxu0
        %1271 = vmatprep.mubr.bf16.mxu0 %v846
        %1272 = vmatmul.mubr.bf16.gmra.mrb[0].mxu0 %v845
        %v1273 = vpop.f32.mrb[0].mxu0
        %v1274 = vadd.f32 0.0, %v1273
        %v1275 = vpop.f32.mrb[0].mxu0
        %v1276 = vpop.f32.mrb[0].mxu0
        %v1277 = vadd.f32 0.0, %v1276
        %v1278 = vpop.f32.mrb[0].mxu0
        %1279 = vmatprep.mubr.bf16.mxu0 %v848
        %1280 = vmatmul.mubr.bf16.gmra.mrb[0].mxu0 %v847
        %v1281 = vpop.f32.mrb[0].mxu0
        %v1282 = vadd.f32 0.0, %v1281
        %v1283 = vpop.f32.mrb[0].mxu0
        %v1284 = vpop.f32.mrb[0].mxu0
        %v1285 = vadd.f32 0.0, %v1284
        %v1286 = vpop.f32.mrb[0].mxu0
        %1287 = vmatprep.mubr.bf16.mxu0 %v850
        %1288 = vmatmul.mubr.bf16.gmra.mrb[0].mxu0 %v849
        %v1289 = vpop.f32.mrb[0].mxu0
        %v1290 = vadd.f32 0.0, %v1289
        %v1291 = vpop.f32.mrb[0].mxu0
        %v1292 = vpop.f32.mrb[0].mxu0
        %v1293 = vadd.f32 0.0, %v1292
        %v1294 = vpop.f32.mrb[0].mxu0
        %1295 = vmatprep.mubr.bf16.mxu0 %v852
        %1296 = vmatmul.mubr.bf16.gmra.mrb[0].mxu0 %v851
        %v1297 = vpop.f32.mrb[0].mxu0
        %v1298 = vadd.f32 0.0, %v1297
        %v1299 = vpop.f32.mrb[0].mxu0
        %v1300 = vpop.f32.mrb[0].mxu0
        %v1301 = vadd.f32 0.0, %v1300
        %v1302 = vpop.f32.mrb[0].mxu0
        %1303 = vmatprep.mubr.bf16.mxu0 %v854
        %1304 = vmatmul.mubr.bf16.gmra.mrb[0].mxu0 %v853
        %v1305 = vpop.f32.mrb[0].mxu0
        %v1306 = vadd.f32 0.0, %v1305
        %v1307 = vpop.f32.mrb[0].mxu0
        %v1308 = vpop.f32.mrb[0].mxu0
        %v1309 = vadd.f32 0.0, %v1308
        %v1310 = vpop.f32.mrb[0].mxu0
        %1311 = vmatprep.mubr.bf16.mxu0 %v856
        %1312 = vmatmul.mubr.bf16.gmra.mrb[0].mxu0 %v855
        %v1313 = vpop.f32.mrb[0].mxu0
        %v1314 = vadd.f32 0.0, %v1313
        %v1315 = vpop.f32.mrb[0].mxu0
        %v1316 = vpop.f32.mrb[0].mxu0
        %v1317 = vadd.f32 0.0, %v1316
        %v1318 = vpop.f32.mrb[0].mxu0
        %1319 = vmatprep.mubr.bf16.mxu0 %v858
        %1320 = vmatmul.mubr.bf16.gmra.mrb[0].mxu0 %v857
        %v1321 = vpop.f32.mrb[0].mxu0
        %v1322 = vadd.f32 0.0, %v1321
        %v1323 = vpop.f32.mrb[0].mxu0
        %v1324 = vpop.f32.mrb[0].mxu0
        %v1325 = vadd.f32 0.0, %v1324
        %v1326 = vpop.f32.mrb[0].mxu0
        %1327 = vmatprep.mubr.bf16.mxu0 %v860
        %1328 = vmatmul.mubr.bf16.gmra.mrb[0].mxu0 %v859
        %v1329 = vpop.f32.mrb[0].mxu0
        %v1330 = vadd.f32 0.0, %v1329
        %v1331 = vpop.f32.mrb[0].mxu0
        %v1332 = vpop.f32.mrb[0].mxu0
        %v1333 = vadd.f32 0.0, %v1332
        %v1334 = vpop.f32.mrb[0].mxu0
        %1335 = vmatprep.mubr.bf16.mxu0 %v862
        %1336 = vmatmul.mubr.bf16.gmra.mrb[0].mxu0 %v861
        %v1337 = vpop.f32.mrb[0].mxu0
        %v1338 = vadd.f32 0.0, %v1337
        %v1339 = vpop.f32.mrb[0].mxu0
        %v1340 = vpop.f32.mrb[0].mxu0
        %v1341 = vadd.f32 0.0, %v1340
        %v1342 = vpop.f32.mrb[0].mxu0
        %1343 = vmatprep.mubr.bf16.mxu0 %v864
        %1344 = vmatmul.mubr.bf16.gmra.mrb[0].mxu0 %v863
        %v1345 = vpop.f32.mrb[0].mxu0
        %v1346 = vadd.f32 0.0, %v1345
        %v1347 = vpop.f32.mrb[0].mxu0
        %v1348 = vpop.f32.mrb[0].mxu0
        %v1349 = vadd.f32 0.0, %v1348
        %v1350 = vpop.f32.mrb[0].mxu0
        %1351 = vmatprep.mubr.bf16.mxu0 %v866
        %1352 = vmatmul.mubr.bf16.gmra.mrb[0].mxu0 %v865
        %v1353 = vpop.f32.mrb[0].mxu0
        %v1354 = vadd.f32 0.0, %v1353
        %v1355 = vpop.f32.mrb[0].mxu0
        %v1356 = vpop.f32.mrb[0].mxu0
        %v1357 = vadd.f32 0.0, %v1356
        %v1358 = vpop.f32.mrb[0].mxu0
        %1359 = vmatprep.mubr.bf16.mxu0 %v868
        %1360 = vmatmul.mubr.bf16.gmra.mrb[0].mxu0 %v867
        %v1361 = vpop.f32.mrb[0].mxu0
        %v1362 = vadd.f32 0.0, %v1361
        %v1363 = vpop.f32.mrb[0].mxu0
        %v1364 = vpop.f32.mrb[0].mxu0
        %v1365 = vadd.f32 0.0, %v1364
        %v1366 = vpop.f32.mrb[0].mxu0
        %1367 = vmatprep.mubr.bf16.mxu0 %v870
        %1368 = vmatmul.mubr.bf16.gmra.mrb[0].mxu0 %v869
        %v1369 = vpop.f32.mrb[0].mxu0
        %v1370 = vadd.f32 0.0, %v1369
        %v1371 = vpop.f32.mrb[0].mxu0
        %v1372 = vpop.f32.mrb[0].mxu0
        %v1373 = vadd.f32 0.0, %v1372
        %v1374 = vpop.f32.mrb[0].mxu0
        %1375 = vmatprep.mubr.bf16.mxu0 %v872
        %1376 = vmatmul.mubr.bf16.gmra.mrb[0].mxu0 %v871
        %v1377 = vpop.f32.mrb[0].mxu0
        %v1378 = vadd.f32 0.0, %v1377
        %v1379 = vpop.f32.mrb[0].mxu0
        %v1380 = vpop.f32.mrb[0].mxu0
        %v1381 = vadd.f32 0.0, %v1380
        %v1382 = vpop.f32.mrb[0].mxu0
        %1383 = vmatprep.mubr.bf16.mxu0 %v874
        %1384 = vmatmul.mubr.bf16.gmra.mrb[0].mxu0 %v873
        %v1385 = vpop.f32.mrb[0].mxu0
        %v1386 = vadd.f32 0.0, %v1385
        %v1387 = vpop.f32.mrb[0].mxu0
        %v1388 = vpop.f32.mrb[0].mxu0
        %v1389 = vadd.f32 0.0, %v1388
        %v1390 = vpop.f32.mrb[0].mxu0
        %1391 = vmatprep.mubr.bf16.mxu0 %v876
        %1392 = vmatmul.mubr.bf16.gmra.mrb[0].mxu0 %v875
        %v1393 = vpop.f32.mrb[0].mxu0
        %v1394 = vadd.f32 0.0, %v1393
        %v1395 = vpop.f32.mrb[0].mxu0
        %v1396 = vpop.f32.mrb[0].mxu0
        %v1397 = vadd.f32 0.0, %v1396
        %v1398 = vpop.f32.mrb[0].mxu0
        %1399 = vmatprep.mubr.bf16.mxu0 %v878
        %1400 = vmatmul.mubr.bf16.gmra.mrb[0].mxu0 %v877
        %v1401 = vpop.f32.mrb[0].mxu0
        %v1402 = vadd.f32 0.0, %v1401
        %v1403 = vpop.f32.mrb[0].mxu0
        %v1404 = vpop.f32.mrb[0].mxu0
        %v1405 = vadd.f32 0.0, %v1404
        %v1406 = vpop.f32.mrb[0].mxu0
        %1407 = vmatprep.mubr.bf16.mxu0 %v880
        %1408 = vmatmul.mubr.bf16.gmra.mrb[0].mxu0 %v879
        %v1409 = vpop.f32.mrb[0].mxu0
        %v1410 = vadd.f32 0.0, %v1409
        %v1411 = vpop.f32.mrb[0].mxu0
        %v1412 = vpop.f32.mrb[0].mxu0
        %v1413 = vadd.f32 0.0, %v1412
        %v1414 = vpop.f32.mrb[0].mxu0
        %1415 = vmatprep.mubr.bf16.mxu0 %v882
        %1416 = vmatmul.mubr.bf16.gmra.mrb[0].mxu0 %v881
        %v1417 = vpop.f32.mrb[0].mxu0
        %v1418 = vadd.f32 0.0, %v1417
        %v1419 = vpop.f32.mrb[0].mxu0
        %v1420 = vpop.f32.mrb[0].mxu0
        %v1421 = vadd.f32 0.0, %v1420
        %v1422 = vpop.f32.mrb[0].mxu0
        %1423 = vmatprep.mubr.bf16.mxu0 %v884
        %1424 = vmatmul.mubr.bf16.gmra.mrb[0].mxu0 %v883
        %v1425 = vpop.f32.mrb[0].mxu0
        %v1426 = vadd.f32 0.0, %v1425
        %v1427 = vpop.f32.mrb[0].mxu0
        %v1428 = vpop.f32.mrb[0].mxu0
        %v1429 = vadd.f32 0.0, %v1428
        %v1430 = vpop.f32.mrb[0].mxu0
        %1431 = vmatprep.mubr.bf16.mxu0 %v886
        %1432 = vmatmul.mubr.bf16.gmra.mrb[0].mxu0 %v885
        %v1433 = vpop.f32.mrb[0].mxu0
        %v1434 = vadd.f32 0.0, %v1433
        %v1435 = vpop.f32.mrb[0].mxu0
        %v1436 = vpop.f32.mrb[0].mxu0
        %v1437 = vadd.f32 0.0, %v1436
        %v1438 = vpop.f32.mrb[0].mxu0
        %1439 = vmatprep.mubr.bf16.mxu0 %v888
        %1440 = vmatmul.mubr.bf16.gmra.mrb[0].mxu0 %v887
        %v1441 = vpop.f32.mrb[0].mxu0
        %v1442 = vadd.f32 0.0, %v1441
        %v1443 = vpop.f32.mrb[0].mxu0
        %v1444 = vpop.f32.mrb[0].mxu0
        %v1445 = vadd.f32 0.0, %v1444
        %v1446 = vpop.f32.mrb[0].mxu0
        %1447 = vmatprep.mubr.bf16.mxu0 %v890
        %1448 = vmatmul.mubr.bf16.gmra.mrb[0].mxu0 %v889
        %v1449 = vpop.f32.mrb[0].mxu0
        %v1450 = vadd.f32 0.0, %v1449
        %v1451 = vpop.f32.mrb[0].mxu0
        %v1452 = vpop.f32.mrb[0].mxu0
        %v1453 = vadd.f32 0.0, %v1452
        %v1454 = vpop.f32.mrb[0].mxu0
        %1455 = vmatprep.mubr.bf16.mxu0 %v892
        %1456 = vmatmul.mubr.bf16.gmra.mrb[0].mxu0 %v891
        %v1457 = vpop.f32.mrb[0].mxu0
        %v1458 = vadd.f32 0.0, %v1457
        %v1459 = vpop.f32.mrb[0].mxu0
        %v1460 = vpop.f32.mrb[0].mxu0
        %v1461 = vadd.f32 0.0, %v1460
        %v1462 = vpop.f32.mrb[0].mxu0
        %1463 = vmatprep.mubr.bf16.mxu0 %v894
        %1464 = vmatmul.mubr.bf16.gmra.mrb[0].mxu0 %v893
        %v1465 = vpop.f32.mrb[0].mxu0
        %v1466 = vadd.f32 0.0, %v1465
        %v1467 = vpop.f32.mrb[0].mxu0
        %v1468 = vpop.f32.mrb[0].mxu0
        %v1469 = vadd.f32 0.0, %v1468
        %v1470 = vpop.f32.mrb[0].mxu0
        %1471 = vmatprep.mubr.bf16.mxu0 %v896
        %1472 = vmatmul.mubr.bf16.gmra.mrb[0].mxu0 %v895
        %v1473 = vpop.f32.mrb[0].mxu0
        %v1474 = vadd.f32 0.0, %v1473
        %v1475 = vpop.f32.mrb[0].mxu0
        %v1476 = vpop.f32.mrb[0].mxu0
        %v1477 = vadd.f32 0.0, %v1476
        %v1478 = vpop.f32.mrb[0].mxu0
        %1479 = vmatprep.mubr.bf16.mxu0 %v898
        %1480 = vmatmul.mubr.bf16.gmra.mrb[0].mxu0 %v897
        %v1481 = vpop.f32.mrb[0].mxu0
        %v1482 = vadd.f32 0.0, %v1481
        %v1483 = vpop.f32.mrb[0].mxu0
        %v1484 = vpop.f32.mrb[0].mxu0
        %v1485 = vadd.f32 0.0, %v1484
        %v1486 = vpop.f32.mrb[0].mxu0
        %1487 = vmatprep.mubr.bf16.mxu0 %v900
        %1488 = vmatmul.mubr.bf16.gmra.mrb[0].mxu0 %v899
        %v1489 = vpop.f32.mrb[0].mxu0
        %v1490 = vadd.f32 0.0, %v1489
        %v1491 = vpop.f32.mrb[0].mxu0
        %v1492 = vpop.f32.mrb[0].mxu0
        %v1493 = vadd.f32 0.0, %v1492
        %v1494 = vpop.f32.mrb[0].mxu0
        %1495 = vmatprep.mubr.bf16.mxu0 %v902
        %1496 = vmatmul.mubr.bf16.gmra.mrb[0].mxu0 %v901
        %v1497 = vpop.f32.mrb[0].mxu0
        %v1498 = vadd.f32 0.0, %v1497
        %v1499 = vpop.f32.mrb[0].mxu0
        %v1500 = vpop.f32.mrb[0].mxu0
        %v1501 = vadd.f32 0.0, %v1500
        %v1502 = vpop.f32.mrb[0].mxu0
        %1503 = vmatprep.mubr.bf16.mxu0 %v904
        %1504 = vmatmul.mubr.bf16.gmra.mrb[0].mxu0 %v903
        %v1505 = vpop.f32.mrb[0].mxu0
        %v1506 = vadd.f32 0.0, %v1505
        %v1507 = vpop.f32.mrb[0].mxu0
        %v1508 = vpop.f32.mrb[0].mxu0
        %v1509 = vadd.f32 0.0, %v1508
        %v1510 = vpop.f32.mrb[0].mxu0
        %1511 = vmatprep.mubr.bf16.mxu0 %v906
        %1512 = vmatmul.mubr.bf16.gmra.mrb[0].mxu0 %v905
        %v1513 = vpop.f32.mrb[0].mxu0
        %v1514 = vadd.f32 0.0, %v1513
        %v1515 = vpop.f32.mrb[0].mxu0
        %v1516 = vpop.f32.mrb[0].mxu0
        %v1517 = vadd.f32 0.0, %v1516
        %v1518 = vpop.f32.mrb[0].mxu0
        %1519 = vmatprep.mubr.bf16.mxu0 %v908
        %1520 = vmatmul.mubr.bf16.gmra.mrb[0].mxu0 %v907
        %v1521 = vpop.f32.mrb[0].mxu0
        %v1522 = vadd.f32 0.0, %v1521
        %v1523 = vpop.f32.mrb[0].mxu0
        %v1524 = vpop.f32.mrb[0].mxu0
        %v1525 = vadd.f32 0.0, %v1524
        %v1526 = vpop.f32.mrb[0].mxu0
        %1527 = vmatprep.mubr.bf16.mxu0 %v910
        %1528 = vmatmul.mubr.bf16.gmra.mrb[0].mxu0 %v909
        %v1529 = vpop.f32.mrb[0].mxu0
        %v1530 = vadd.f32 0.0, %v1529
        %v1531 = vpop.f32.mrb[0].mxu0
        %v1532 = vpop.f32.mrb[0].mxu0
        %v1533 = vadd.f32 0.0, %v1532
        %v1534 = vpop.f32.mrb[0].mxu0
        %1535 = vmatprep.mubr.bf16.mxu0 %v912
        %1536 = vmatmul.mubr.bf16.gmra.mrb[0].mxu0 %v911
        %v1537 = vpop.f32.mrb[0].mxu0
        %v1538 = vadd.f32 0.0, %v1537
        %v1539 = vpop.f32.mrb[0].mxu0
        %v1540 = vpop.f32.mrb[0].mxu0
        %v1541 = vadd.f32 0.0, %v1540
        %v1542 = vpop.f32.mrb[0].mxu0
        %1543 = vmatprep.mubr.bf16.mxu0 %v914
        %1544 = vmatmul.mubr.bf16.gmra.mrb[0].mxu0 %v913
        %v1545 = vpop.f32.mrb[0].mxu0
        %v1546 = vadd.f32 0.0, %v1545
        %v1547 = vpop.f32.mrb[0].mxu0
        %v1548 = vpop.f32.mrb[0].mxu0
        %v1549 = vadd.f32 0.0, %v1548
        %v1550 = vpop.f32.mrb[0].mxu0
        %1551 = vmatprep.mubr.bf16.mxu0 %v916
        %1552 = vmatmul.mubr.bf16.gmra.mrb[0].mxu0 %v915
        %v1553 = vpop.f32.mrb[0].mxu0
        %v1554 = vadd.f32 0.0, %v1553
        %v1555 = vpop.f32.mrb[0].mxu0
        %v1556 = vpop.f32.mrb[0].mxu0
        %v1557 = vadd.f32 0.0, %v1556
        %v1558 = vpop.f32.mrb[0].mxu0
        %1559 = vmatprep.mubr.bf16.mxu0 %v918
        %1560 = vmatmul.mubr.bf16.gmra.mrb[0].mxu0 %v917
        %v1561 = vpop.f32.mrb[0].mxu0
        %v1562 = vadd.f32 0.0, %v1561
        %v1563 = vpop.f32.mrb[0].mxu0
        %v1564 = vpop.f32.mrb[0].mxu0
        %v1565 = vadd.f32 0.0, %v1564
        %v1566 = vpop.f32.mrb[0].mxu0
        %1567 = vmatprep.mubr.bf16.mxu0 %v920
        %1568 = vmatmul.mubr.bf16.gmra.mrb[0].mxu0 %v919
        %v1569 = vpop.f32.mrb[0].mxu0
        %v1570 = vadd.f32 0.0, %v1569
        %v1571 = vpop.f32.mrb[0].mxu0
        %v1572 = vpop.f32.mrb[0].mxu0
        %v1573 = vadd.f32 0.0, %v1572
        %v1574 = vpop.f32.mrb[0].mxu0
        %1575 = vmatprep.mubr.bf16.mxu0 %v922
        %1576 = vmatmul.mubr.bf16.gmra.mrb[0].mxu0 %v921
        %v1577 = vpop.f32.mrb[0].mxu0
        %v1578 = vadd.f32 0.0, %v1577
        %v1579 = vpop.f32.mrb[0].mxu0
        %v1580 = vpop.f32.mrb[0].mxu0
        %v1581 = vadd.f32 0.0, %v1580
        %v1582 = vpop.f32.mrb[0].mxu0
        %1583 = vmatprep.mubr.bf16.mxu0 %v924
        %1584 = vmatmul.mubr.bf16.gmra.mrb[0].mxu0 %v923
        %v1585 = vpop.f32.mrb[0].mxu0
        %v1586 = vadd.f32 0.0, %v1585
        %v1587 = vpop.f32.mrb[0].mxu0
        %v1588 = vpop.f32.mrb[0].mxu0
        %v1589 = vadd.f32 0.0, %v1588
        %v1590 = vpop.f32.mrb[0].mxu0
        %1591 = vmatprep.mubr.bf16.mxu0 %v926
        %1592 = vmatmul.mubr.bf16.gmra.mrb[0].mxu0 %v925
        %v1593 = vpop.f32.mrb[0].mxu0
        %v1594 = vadd.f32 0.0, %v1593
        %v1595 = vpop.f32.mrb[0].mxu0
        %v1596 = vpop.f32.mrb[0].mxu0
        %v1597 = vadd.f32 0.0, %v1596
        %v1598 = vpop.f32.mrb[0].mxu0
        %1599 = vmatprep.mubr.bf16.mxu0 %v928
        %1600 = vmatmul.mubr.bf16.gmra.mrb[0].mxu0 %v927
        %v1601 = vpop.f32.mrb[0].mxu0
        %v1602 = vadd.f32 0.0, %v1601
        %v1603 = vpop.f32.mrb[0].mxu0
        %v1604 = vpop.f32.mrb[0].mxu0
        %v1605 = vadd.f32 0.0, %v1604
        %v1606 = vpop.f32.mrb[0].mxu0
        %1607 = vmatprep.mubr.bf16.mxu0 %v930
        %1608 = vmatmul.mubr.bf16.gmra.mrb[0].mxu0 %v929
        %v1609 = vpop.f32.mrb[0].mxu0
        %v1610 = vadd.f32 0.0, %v1609
        %v1611 = vpop.f32.mrb[0].mxu0
        %v1612 = vpop.f32.mrb[0].mxu0
        %v1613 = vadd.f32 0.0, %v1612
        %v1614 = vpop.f32.mrb[0].mxu0
        %1615 = vmatprep.mubr.bf16.mxu0 %v932
        %1616 = vmatmul.mubr.bf16.gmra.mrb[0].mxu0 %v931
        %v1617 = vpop.f32.mrb[0].mxu0
        %v1618 = vadd.f32 0.0, %v1617
        %v1619 = vpop.f32.mrb[0].mxu0
        %v1620 = vpop.f32.mrb[0].mxu0
        %v1621 = vadd.f32 0.0, %v1620
        %v1622 = vpop.f32.mrb[0].mxu0
        %1623 = vmatprep.mubr.bf16.mxu0 %v934
        %1624 = vmatmul.mubr.bf16.gmra.mrb[0].mxu0 %v933
        %v1625 = vpop.f32.mrb[0].mxu0
        %v1626 = vadd.f32 0.0, %v1625
        %v1627 = vpop.f32.mrb[0].mxu0
        %v1628 = vpop.f32.mrb[0].mxu0
        %v1629 = vadd.f32 0.0, %v1628
        %v1630 = vpop.f32.mrb[0].mxu0
        %1631 = vmatprep.mubr.bf16.mxu0 %v936
        %1632 = vmatmul.mubr.bf16.gmra.mrb[0].mxu0 %v935
        %v1633 = vpop.f32.mrb[0].mxu0
        %v1634 = vadd.f32 0.0, %v1633
        %v1635 = vpop.f32.mrb[0].mxu0
        %v1636 = vpop.f32.mrb[0].mxu0
        %v1637 = vadd.f32 0.0, %v1636
        %v1638 = vpop.f32.mrb[0].mxu0
        %1639 = vmatprep.mubr.bf16.mxu0 %v938
        %1640 = vmatmul.mubr.bf16.gmra.mrb[0].mxu0 %v937
        %v1641 = vpop.f32.mrb[0].mxu0
        %v1642 = vadd.f32 0.0, %v1641
        %v1643 = vpop.f32.mrb[0].mxu0
        %v1644 = vpop.f32.mrb[0].mxu0
        %v1645 = vadd.f32 0.0, %v1644
        %v1646 = vpop.f32.mrb[0].mxu0
        %1647 = vmatprep.mubr.bf16.mxu0 %v940
        %1648 = vmatmul.mubr.bf16.gmra.mrb[0].mxu0 %v939
        %v1649 = vpop.f32.mrb[0].mxu0
        %v1650 = vadd.f32 0.0, %v1649
        %v1651 = vpop.f32.mrb[0].mxu0
        %v1652 = vpop.f32.mrb[0].mxu0
        %v1653 = vadd.f32 0.0, %v1652
        %v1654 = vpop.f32.mrb[0].mxu0
        %1655 = vmatprep.mubr.bf16.mxu0 %v942
        %1656 = vmatmul.mubr.bf16.gmra.mrb[0].mxu0 %v941
        %v1657 = vpop.f32.mrb[0].mxu0
        %v1658 = vadd.f32 0.0, %v1657
        %v1659 = vpop.f32.mrb[0].mxu0
        %v1660 = vpop.f32.mrb[0].mxu0
        %v1661 = vadd.f32 0.0, %v1660
        %v1662 = vpop.f32.mrb[0].mxu0
        %1663 = vmatprep.mubr.bf16.mxu0 %v944
        %1664 = vmatmul.mubr.bf16.gmra.mrb[0].mxu0 %v943
        %v1665 = vpop.f32.mrb[0].mxu0
        %v1666 = vadd.f32 0.0, %v1665
        %v1667 = vpop.f32.mrb[0].mxu0
        %v1668 = vpop.f32.mrb[0].mxu0
        %v1669 = vadd.f32 0.0, %v1668
        %v1670 = vpop.f32.mrb[0].mxu0
        %1671 = vmatprep.mubr.bf16.mxu0 %v946
        %1672 = vmatmul.mubr.bf16.gmra.mrb[0].mxu0 %v945
        %v1673 = vpop.f32.mrb[0].mxu0
        %v1674 = vadd.f32 0.0, %v1673
        %v1675 = vpop.f32.mrb[0].mxu0
        %v1676 = vpop.f32.mrb[0].mxu0
        %v1677 = vadd.f32 0.0, %v1676
        %v1678 = vpop.f32.mrb[0].mxu0
        %1679 = vmatprep.mubr.bf16.mxu0 %v948
        %1680 = vmatmul.mubr.bf16.gmra.mrb[0].mxu0 %v947
        %v1681 = vpop.f32.mrb[0].mxu0
        %v1682 = vadd.f32 0.0, %v1681
        %v1683 = vpop.f32.mrb[0].mxu0
        %v1684 = vpop.f32.mrb[0].mxu0
        %v1685 = vadd.f32 0.0, %v1684
        %v1686 = vpop.f32.mrb[0].mxu0
        %1687 = vmatprep.mubr.bf16.mxu0 %v950
        %1688 = vmatmul.mubr.bf16.gmra.mrb[0].mxu0 %v949
        %v1689 = vpop.f32.mrb[0].mxu0
        %v1690 = vadd.f32 0.0, %v1689
        %v1691 = vpop.f32.mrb[0].mxu0
        %v1692 = vpop.f32.mrb[0].mxu0
        %v1693 = vadd.f32 0.0, %v1692
        %v1694 = vpop.f32.mrb[0].mxu0
        %1695 = vmatprep.mubr.bf16.mxu0 %v952
        %1696 = vmatmul.mubr.bf16.gmra.mrb[0].mxu0 %v951
        %v1697 = vpop.f32.mrb[0].mxu0
        %v1698 = vadd.f32 0.0, %v1697
        %v1699 = vpop.f32.mrb[0].mxu0
        %v1700 = vpop.f32.mrb[0].mxu0
        %v1701 = vadd.f32 0.0, %v1700
        %v1702 = vpop.f32.mrb[0].mxu0
        %1703 = vmatprep.mubr.bf16.mxu0 %v954
        %1704 = vmatmul.mubr.bf16.gmra.mrb[0].mxu0 %v953
        %v1705 = vpop.f32.mrb[0].mxu0
        %v1706 = vadd.f32 0.0, %v1705
        %v1707 = vpop.f32.mrb[0].mxu0
        %v1708 = vpop.f32.mrb[0].mxu0
        %v1709 = vadd.f32 0.0, %v1708
        %v1710 = vpop.f32.mrb[0].mxu0
        %1711 = vmatprep.mubr.bf16.mxu0 %v956
        %1712 = vmatmul.mubr.bf16.gmra.mrb[0].mxu0 %v955
        %v1713 = vpop.f32.mrb[0].mxu0
        %v1714 = vadd.f32 0.0, %v1713
        %v1715 = vpop.f32.mrb[0].mxu0
        %v1716 = vpop.f32.mrb[0].mxu0
        %v1717 = vadd.f32 0.0, %v1716
        %v1718 = vpop.f32.mrb[0].mxu0
        %1719 = vmatprep.mubr.bf16.mxu0 %v958
        %1720 = vmatmul.mubr.bf16.gmra.mrb[0].mxu0 %v957
        %v1721 = vpop.f32.mrb[0].mxu0
        %v1722 = vadd.f32 0.0, %v1721
        %v1723 = vpop.f32.mrb[0].mxu0
        %v1724 = vpop.f32.mrb[0].mxu0
        %v1725 = vadd.f32 0.0, %v1724
        %v1726 = vpop.f32.mrb[0].mxu0
        %1727 = vdwg.mxu0
        %v1728 = vld [vmem:[%s273] sm:$0x1]
        %v1730 = vlaneseq
        %v1731 = vshrl.u32 %v1730, 7
        %v1732 = vsub.s32 0, %v1731
        %v1733 = vrot.slane %v1728, %v1732
        %v1735 = vmul.f32 %v1218, %v1733
        %v1736 = vmul.f32 %v1221, %v1733
        %v1737 = vmul.f32 %v1226, %v1733
        %v1738 = vmul.f32 %v1229, %v1733
        %v1739 = vmul.f32 %v1234, %v1733
        %v1740 = vmul.f32 %v1237, %v1733
        %v1741 = vmul.f32 %v1242, %v1733
        %v1742 = vmul.f32 %v1245, %v1733
        %v1743 = vmul.f32 %v1250, %v1733
        %v1744 = vmul.f32 %v1253, %v1733
        %v1745 = vmul.f32 %v1258, %v1733
        %v1746 = vmul.f32 %v1261, %v1733
        %v1747 = vmul.f32 %v1266, %v1733
        %v1748 = vmul.f32 %v1269, %v1733
        %v1749 = vmul.f32 %v1274, %v1733
        %v1750 = vmul.f32 %v1277, %v1733
        %v1751 = vmul.f32 %v1282, %v1733
        %v1752 = vmul.f32 %v1285, %v1733
        %v1753 = vmul.f32 %v1290, %v1733
        %v1754 = vmul.f32 %v1293, %v1733
        %v1755 = vmul.f32 %v1298, %v1733
        %v1756 = vmul.f32 %v1301, %v1733
        %v1757 = vmul.f32 %v1306, %v1733
        %v1758 = vmul.f32 %v1309, %v1733
        %v1759 = vmul.f32 %v1314, %v1733
        %v1760 = vmul.f32 %v1317, %v1733
        %v1761 = vmul.f32 %v1322, %v1733
        %v1762 = vmul.f32 %v1325, %v1733
        %v1763 = vmul.f32 %v1330, %v1733
        %v1764 = vmul.f32 %v1333, %v1733
        %v1765 = vmul.f32 %v1338, %v1733
        %v1766 = vmul.f32 %v1341, %v1733
        %v1767 = vmul.f32 %v1346, %v1733
        %v1768 = vmul.f32 %v1349, %v1733
        %v1769 = vmul.f32 %v1354, %v1733
        %v1770 = vmul.f32 %v1357, %v1733
        %v1771 = vmul.f32 %v1362, %v1733
        %v1772 = vmul.f32 %v1365, %v1733
        %v1773 = vmul.f32 %v1370, %v1733
        %v1774 = vmul.f32 %v1373, %v1733
        %v1775 = vmul.f32 %v1378, %v1733
        %v1776 = vmul.f32 %v1381, %v1733
        %v1777 = vmul.f32 %v1386, %v1733
        %v1778 = vmul.f32 %v1389, %v1733
        %v1779 = vmul.f32 %v1394, %v1733
        %v1780 = vmul.f32 %v1397, %v1733
        %v1781 = vmul.f32 %v1402, %v1733
        %v1782 = vmul.f32 %v1405, %v1733
        %v1783 = vmul.f32 %v1410, %v1733
        %v1784 = vmul.f32 %v1413, %v1733
        %v1785 = vmul.f32 %v1418, %v1733
        %v1786 = vmul.f32 %v1421, %v1733
        %v1787 = vmul.f32 %v1426, %v1733
        %v1788 = vmul.f32 %v1429, %v1733
        %v1789 = vmul.f32 %v1434, %v1733
        %v1790 = vmul.f32 %v1437, %v1733
        %v1791 = vmul.f32 %v1442, %v1733
        %v1792 = vmul.f32 %v1445, %v1733
        %v1793 = vmul.f32 %v1450, %v1733
        %v1794 = vmul.f32 %v1453, %v1733
        %v1795 = vmul.f32 %v1458, %v1733
        %v1796 = vmul.f32 %v1461, %v1733
        %v1797 = vmul.f32 %v1466, %v1733
        %v1798 = vmul.f32 %v1469, %v1733
        %v1799 = vmul.f32 %v1474, %v1733
        %v1800 = vmul.f32 %v1477, %v1733
        %v1801 = vmul.f32 %v1482, %v1733
        %v1802 = vmul.f32 %v1485, %v1733
        %v1803 = vmul.f32 %v1490, %v1733
        %v1804 = vmul.f32 %v1493, %v1733
        %v1805 = vmul.f32 %v1498, %v1733
        %v1806 = vmul.f32 %v1501, %v1733
        %v1807 = vmul.f32 %v1506, %v1733
        %v1808 = vmul.f32 %v1509, %v1733
        %v1809 = vmul.f32 %v1514, %v1733
        %v1810 = vmul.f32 %v1517, %v1733
        %v1811 = vmul.f32 %v1522, %v1733
        %v1812 = vmul.f32 %v1525, %v1733
        %v1813 = vmul.f32 %v1530, %v1733
        %v1814 = vmul.f32 %v1533, %v1733
        %v1815 = vmul.f32 %v1538, %v1733
        %v1816 = vmul.f32 %v1541, %v1733
        %v1817 = vmul.f32 %v1546, %v1733
        %v1818 = vmul.f32 %v1549, %v1733
        %v1819 = vmul.f32 %v1554, %v1733
        %v1820 = vmul.f32 %v1557, %v1733
        %v1821 = vmul.f32 %v1562, %v1733
        %v1822 = vmul.f32 %v1565, %v1733
        %v1823 = vmul.f32 %v1570, %v1733
        %v1824 = vmul.f32 %v1573, %v1733
        %v1825 = vmul.f32 %v1578, %v1733
        %v1826 = vmul.f32 %v1581, %v1733
        %v1827 = vmul.f32 %v1586, %v1733
        %v1828 = vmul.f32 %v1589, %v1733
        %v1829 = vmul.f32 %v1594, %v1733
        %v1830 = vmul.f32 %v1597, %v1733
        %v1831 = vmul.f32 %v1602, %v1733
        %v1832 = vmul.f32 %v1605, %v1733
        %v1833 = vmul.f32 %v1610, %v1733
        %v1834 = vmul.f32 %v1613, %v1733
        %v1835 = vmul.f32 %v1618, %v1733
        %v1836 = vmul.f32 %v1621, %v1733
        %v1837 = vmul.f32 %v1626, %v1733
        %v1838 = vmul.f32 %v1629, %v1733
        %v1839 = vmul.f32 %v1634, %v1733
        %v1840 = vmul.f32 %v1637, %v1733
        %v1841 = vmul.f32 %v1642, %v1733
        %v1842 = vmul.f32 %v1645, %v1733
        %v1843 = vmul.f32 %v1650, %v1733
        %v1844 = vmul.f32 %v1653, %v1733
        %v1845 = vmul.f32 %v1658, %v1733
        %v1846 = vmul.f32 %v1661, %v1733
        %v1847 = vmul.f32 %v1666, %v1733
        %v1848 = vmul.f32 %v1669, %v1733
        %v1849 = vmul.f32 %v1674, %v1733
        %v1850 = vmul.f32 %v1677, %v1733
        %v1851 = vmul.f32 %v1682, %v1733
        %v1852 = vmul.f32 %v1685, %v1733
        %v1853 = vmul.f32 %v1690, %v1733
        %v1854 = vmul.f32 %v1693, %v1733
        %v1855 = vmul.f32 %v1698, %v1733
        %v1856 = vmul.f32 %v1701, %v1733
        %v1857 = vmul.f32 %v1706, %v1733
        %v1858 = vmul.f32 %v1709, %v1733
        %v1859 = vmul.f32 %v1714, %v1733
        %v1860 = vmul.f32 %v1717, %v1733
        %v1861 = vmul.f32 %v1722, %v1733
        %v1862 = vmul.f32 %v1725, %v1733
        %v1863 = vld [vmem:[%s276] sm:$0x1]
        %v1865 = vlaneseq
        %v1866 = vshrl.u32 %v1865, 7
        %v1867 = vsub.s32 0, %v1866
        %v1868 = vrot.slane %v1863, %v1867
        %v1870 = vadd.f32 %v1735, %v1868
        %v1871 = vadd.f32 %v1736, %v1868
        %v1872 = vadd.f32 %v1737, %v1868
        %v1873 = vadd.f32 %v1738, %v1868
        %v1874 = vadd.f32 %v1739, %v1868
        %v1875 = vadd.f32 %v1740, %v1868
        %v1876 = vadd.f32 %v1741, %v1868
        %v1877 = vadd.f32 %v1742, %v1868
        %v1878 = vadd.f32 %v1743, %v1868
        %v1879 = vadd.f32 %v1744, %v1868
        %v1880 = vadd.f32 %v1745, %v1868
        %v1881 = vadd.f32 %v1746, %v1868
        %v1882 = vadd.f32 %v1747, %v1868
        %v1883 = vadd.f32 %v1748, %v1868
        %v1884 = vadd.f32 %v1749, %v1868
        %v1885 = vadd.f32 %v1750, %v1868
        %v1886 = vadd.f32 %v1751, %v1868
        %v1887 = vadd.f32 %v1752, %v1868
        %v1888 = vadd.f32 %v1753, %v1868
        %v1889 = vadd.f32 %v1754, %v1868
        %v1890 = vadd.f32 %v1755, %v1868
        %v1891 = vadd.f32 %v1756, %v1868
        %v1892 = vadd.f32 %v1757, %v1868
        %v1893 = vadd.f32 %v1758, %v1868
        %v1894 = vadd.f32 %v1759, %v1868
        %v1895 = vadd.f32 %v1760, %v1868
        %v1896 = vadd.f32 %v1761, %v1868
        %v1897 = vadd.f32 %v1762, %v1868
        %v1898 = vadd.f32 %v1763, %v1868
        %v1899 = vadd.f32 %v1764, %v1868
        %v1900 = vadd.f32 %v1765, %v1868
        %v1901 = vadd.f32 %v1766, %v1868
        %v1902 = vadd.f32 %v1767, %v1868
        %v1903 = vadd.f32 %v1768, %v1868
        %v1904 = vadd.f32 %v1769, %v1868
        %v1905 = vadd.f32 %v1770, %v1868
        %v1906 = vadd.f32 %v1771, %v1868
        %v1907 = vadd.f32 %v1772, %v1868
        %v1908 = vadd.f32 %v1773, %v1868
        %v1909 = vadd.f32 %v1774, %v1868
        %v1910 = vadd.f32 %v1775, %v1868
        %v1911 = vadd.f32 %v1776, %v1868
        %v1912 = vadd.f32 %v1777, %v1868
        %v1913 = vadd.f32 %v1778, %v1868
        %v1914 = vadd.f32 %v1779, %v1868
        %v1915 = vadd.f32 %v1780, %v1868
        %v1916 = vadd.f32 %v1781, %v1868
        %v1917 = vadd.f32 %v1782, %v1868
        %v1918 = vadd.f32 %v1783, %v1868
        %v1919 = vadd.f32 %v1784, %v1868
        %v1920 = vadd.f32 %v1785, %v1868
        %v1921 = vadd.f32 %v1786, %v1868
        %v1922 = vadd.f32 %v1787, %v1868
        %v1923 = vadd.f32 %v1788, %v1868
        %v1924 = vadd.f32 %v1789, %v1868
        %v1925 = vadd.f32 %v1790, %v1868
        %v1926 = vadd.f32 %v1791, %v1868
        %v1927 = vadd.f32 %v1792, %v1868
        %v1928 = vadd.f32 %v1793, %v1868
        %v1929 = vadd.f32 %v1794, %v1868
        %v1930 = vadd.f32 %v1795, %v1868
        %v1931 = vadd.f32 %v1796, %v1868
        %v1932 = vadd.f32 %v1797, %v1868
        %v1933 = vadd.f32 %v1798, %v1868
        %v1934 = vadd.f32 %v1799, %v1868
        %v1935 = vadd.f32 %v1800, %v1868
        %v1936 = vadd.f32 %v1801, %v1868
        %v1937 = vadd.f32 %v1802, %v1868
        %v1938 = vadd.f32 %v1803, %v1868
        %v1939 = vadd.f32 %v1804, %v1868
        %v1940 = vadd.f32 %v1805, %v1868
        %v1941 = vadd.f32 %v1806, %v1868
        %v1942 = vadd.f32 %v1807, %v1868
        %v1943 = vadd.f32 %v1808, %v1868
        %v1944 = vadd.f32 %v1809, %v1868
        %v1945 = vadd.f32 %v1810, %v1868
        %v1946 = vadd.f32 %v1811, %v1868
        %v1947 = vadd.f32 %v1812, %v1868
        %v1948 = vadd.f32 %v1813, %v1868
        %v1949 = vadd.f32 %v1814, %v1868
        %v1950 = vadd.f32 %v1815, %v1868
        %v1951 = vadd.f32 %v1816, %v1868
        %v1952 = vadd.f32 %v1817, %v1868
        %v1953 = vadd.f32 %v1818, %v1868
        %v1954 = vadd.f32 %v1819, %v1868
        %v1955 = vadd.f32 %v1820, %v1868
        %v1956 = vadd.f32 %v1821, %v1868
        %v1957 = vadd.f32 %v1822, %v1868
        %v1958 = vadd.f32 %v1823, %v1868
        %v1959 = vadd.f32 %v1824, %v1868
        %v1960 = vadd.f32 %v1825, %v1868
        %v1961 = vadd.f32 %v1826, %v1868
        %v1962 = vadd.f32 %v1827, %v1868
        %v1963 = vadd.f32 %v1828, %v1868
        %v1964 = vadd.f32 %v1829, %v1868
        %v1965 = vadd.f32 %v1830, %v1868
        %v1966 = vadd.f32 %v1831, %v1868
        %v1967 = vadd.f32 %v1832, %v1868
        %v1968 = vadd.f32 %v1833, %v1868
        %v1969 = vadd.f32 %v1834, %v1868
        %v1970 = vadd.f32 %v1835, %v1868
        %v1971 = vadd.f32 %v1836, %v1868
        %v1972 = vadd.f32 %v1837, %v1868
        %v1973 = vadd.f32 %v1838, %v1868
        %v1974 = vadd.f32 %v1839, %v1868
        %v1975 = vadd.f32 %v1840, %v1868
        %v1976 = vadd.f32 %v1841, %v1868
        %v1977 = vadd.f32 %v1842, %v1868
        %v1978 = vadd.f32 %v1843, %v1868
        %v1979 = vadd.f32 %v1844, %v1868
        %v1980 = vadd.f32 %v1845, %v1868
        %v1981 = vadd.f32 %v1846, %v1868
        %v1982 = vadd.f32 %v1847, %v1868
        %v1983 = vadd.f32 %v1848, %v1868
        %v1984 = vadd.f32 %v1849, %v1868
        %v1985 = vadd.f32 %v1850, %v1868
        %v1986 = vadd.f32 %v1851, %v1868
        %v1987 = vadd.f32 %v1852, %v1868
        %v1988 = vadd.f32 %v1853, %v1868
        %v1989 = vadd.f32 %v1854, %v1868
        %v1990 = vadd.f32 %v1855, %v1868
        %v1991 = vadd.f32 %v1856, %v1868
        %v1992 = vadd.f32 %v1857, %v1868
        %v1993 = vadd.f32 %v1858, %v1868
        %v1994 = vadd.f32 %v1859, %v1868
        %v1995 = vadd.f32 %v1860, %v1868
        %v1996 = vadd.f32 %v1861, %v1868
        %v1997 = vadd.f32 %v1862, %v1868
        %v1998 = vmax.f32 %v1870, 0.0
        %v1999 = vmax.f32 %v1871, 0.0
        %v2000 = vmax.f32 %v1872, 0.0
        %v2001 = vmax.f32 %v1873, 0.0
        %v2002 = vmax.f32 %v1874, 0.0
        %v2003 = vmax.f32 %v1875, 0.0
        %v2004 = vmax.f32 %v1876, 0.0
        %v2005 = vmax.f32 %v1877, 0.0
        %v2006 = vmax.f32 %v1878, 0.0
        %v2007 = vmax.f32 %v1879, 0.0
        %v2008 = vmax.f32 %v1880, 0.0
        %v2009 = vmax.f32 %v1881, 0.0
        %v2010 = vmax.f32 %v1882, 0.0
        %v2011 = vmax.f32 %v1883, 0.0
        %v2012 = vmax.f32 %v1884, 0.0
        %v2013 = vmax.f32 %v1885, 0.0
        %v2014 = vmax.f32 %v1886, 0.0
        %v2015 = vmax.f32 %v1887, 0.0
        %v2016 = vmax.f32 %v1888, 0.0
        %v2017 = vmax.f32 %v1889, 0.0
        %v2018 = vmax.f32 %v1890, 0.0
        %v2019 = vmax.f32 %v1891, 0.0
        %v2020 = vmax.f32 %v1892, 0.0
        %v2021 = vmax.f32 %v1893, 0.0
        %v2022 = vmax.f32 %v1894, 0.0
        %v2023 = vmax.f32 %v1895, 0.0
        %v2024 = vmax.f32 %v1896, 0.0
        %v2025 = vmax.f32 %v1897, 0.0
        %v2026 = vmax.f32 %v1898, 0.0
        %v2027 = vmax.f32 %v1899, 0.0
        %v2028 = vmax.f32 %v1900, 0.0
        %v2029 = vmax.f32 %v1901, 0.0
        %v2030 = vmax.f32 %v1902, 0.0
        %v2031 = vmax.f32 %v1903, 0.0
        %v2032 = vmax.f32 %v1904, 0.0
        %v2033 = vmax.f32 %v1905, 0.0
        %v2034 = vmax.f32 %v1906, 0.0
        %v2035 = vmax.f32 %v1907, 0.0
        %v2036 = vmax.f32 %v1908, 0.0
        %v2037 = vmax.f32 %v1909, 0.0
        %v2038 = vmax.f32 %v1910, 0.0
        %v2039 = vmax.f32 %v1911, 0.0
        %v2040 = vmax.f32 %v1912, 0.0
        %v2041 = vmax.f32 %v1913, 0.0
        %v2042 = vmax.f32 %v1914, 0.0
        %v2043 = vmax.f32 %v1915, 0.0
        %v2044 = vmax.f32 %v1916, 0.0
        %v2045 = vmax.f32 %v1917, 0.0
        %v2046 = vmax.f32 %v1918, 0.0
        %v2047 = vmax.f32 %v1919, 0.0
        %v2048 = vmax.f32 %v1920, 0.0
        %v2049 = vmax.f32 %v1921, 0.0
        %v2050 = vmax.f32 %v1922, 0.0
        %v2051 = vmax.f32 %v1923, 0.0
        %v2052 = vmax.f32 %v1924, 0.0
        %v2053 = vmax.f32 %v1925, 0.0
        %v2054 = vmax.f32 %v1926, 0.0
        %v2055 = vmax.f32 %v1927, 0.0
        %v2056 = vmax.f32 %v1928, 0.0
        %v2057 = vmax.f32 %v1929, 0.0
        %v2058 = vmax.f32 %v1930, 0.0
        %v2059 = vmax.f32 %v1931, 0.0
        %v2060 = vmax.f32 %v1932, 0.0
        %v2061 = vmax.f32 %v1933, 0.0
        %v2062 = vmax.f32 %v1934, 0.0
        %v2063 = vmax.f32 %v1935, 0.0
        %v2064 = vmax.f32 %v1936, 0.0
        %v2065 = vmax.f32 %v1937, 0.0
        %v2066 = vmax.f32 %v1938, 0.0
        %v2067 = vmax.f32 %v1939, 0.0
        %v2068 = vmax.f32 %v1940, 0.0
        %v2069 = vmax.f32 %v1941, 0.0
        %v2070 = vmax.f32 %v1942, 0.0
        %v2071 = vmax.f32 %v1943, 0.0
        %v2072 = vmax.f32 %v1944, 0.0
        %v2073 = vmax.f32 %v1945, 0.0
        %v2074 = vmax.f32 %v1946, 0.0
        %v2075 = vmax.f32 %v1947, 0.0
        %v2076 = vmax.f32 %v1948, 0.0
        %v2077 = vmax.f32 %v1949, 0.0
        %v2078 = vmax.f32 %v1950, 0.0
        %v2079 = vmax.f32 %v1951, 0.0
        %v2080 = vmax.f32 %v1952, 0.0
        %v2081 = vmax.f32 %v1953, 0.0
        %v2082 = vmax.f32 %v1954, 0.0
        %v2083 = vmax.f32 %v1955, 0.0
        %v2084 = vmax.f32 %v1956, 0.0
        %v2085 = vmax.f32 %v1957, 0.0
        %v2086 = vmax.f32 %v1958, 0.0
        %v2087 = vmax.f32 %v1959, 0.0
        %v2088 = vmax.f32 %v1960, 0.0
        %v2089 = vmax.f32 %v1961, 0.0
        %v2090 = vmax.f32 %v1962, 0.0
        %v2091 = vmax.f32 %v1963, 0.0
        %v2092 = vmax.f32 %v1964, 0.0
        %v2093 = vmax.f32 %v1965, 0.0
        %v2094 = vmax.f32 %v1966, 0.0
        %v2095 = vmax.f32 %v1967, 0.0
        %v2096 = vmax.f32 %v1968, 0.0
        %v2097 = vmax.f32 %v1969, 0.0
        %v2098 = vmax.f32 %v1970, 0.0
        %v2099 = vmax.f32 %v1971, 0.0
        %v2100 = vmax.f32 %v1972, 0.0
        %v2101 = vmax.f32 %v1973, 0.0
        %v2102 = vmax.f32 %v1974, 0.0
        %v2103 = vmax.f32 %v1975, 0.0
        %v2104 = vmax.f32 %v1976, 0.0
        %v2105 = vmax.f32 %v1977, 0.0
        %v2106 = vmax.f32 %v1978, 0.0
        %v2107 = vmax.f32 %v1979, 0.0
        %v2108 = vmax.f32 %v1980, 0.0
        %v2109 = vmax.f32 %v1981, 0.0
        %v2110 = vmax.f32 %v1982, 0.0
        %v2111 = vmax.f32 %v1983, 0.0
        %v2112 = vmax.f32 %v1984, 0.0
        %v2113 = vmax.f32 %v1985, 0.0
        %v2114 = vmax.f32 %v1986, 0.0
        %v2115 = vmax.f32 %v1987, 0.0
        %v2116 = vmax.f32 %v1988, 0.0
        %v2117 = vmax.f32 %v1989, 0.0
        %v2118 = vmax.f32 %v1990, 0.0
        %v2119 = vmax.f32 %v1991, 0.0
        %v2120 = vmax.f32 %v1992, 0.0
        %v2121 = vmax.f32 %v1993, 0.0
        %v2122 = vmax.f32 %v1994, 0.0
        %v2123 = vmax.f32 %v1995, 0.0
        %v2124 = vmax.f32 %v1996, 0.0
        %v2125 = vmax.f32 %v1997, 0.0
        %v2126 = vpack.c.bf16 %v1999, %v1998
        %v2127 = vpack.c.bf16 %v2001, %v2000
        %v2128 = vpack.c.bf16 %v2003, %v2002
        %v2129 = vpack.c.bf16 %v2005, %v2004
        %v2130 = vpack.c.bf16 %v2007, %v2006
        %v2131 = vpack.c.bf16 %v2009, %v2008
        %v2132 = vpack.c.bf16 %v2011, %v2010
        %v2133 = vpack.c.bf16 %v2013, %v2012
        %v2134 = vpack.c.bf16 %v2015, %v2014
        %v2135 = vpack.c.bf16 %v2017, %v2016
        %v2136 = vpack.c.bf16 %v2019, %v2018
        %v2137 = vpack.c.bf16 %v2021, %v2020
        %v2138 = vpack.c.bf16 %v2023, %v2022
        %v2139 = vpack.c.bf16 %v2025, %v2024
        %v2140 = vpack.c.bf16 %v2027, %v2026
        %v2141 = vpack.c.bf16 %v2029, %v2028
        %v2142 = vpack.c.bf16 %v2031, %v2030
        %v2143 = vpack.c.bf16 %v2033, %v2032
        %v2144 = vpack.c.bf16 %v2035, %v2034
        %v2145 = vpack.c.bf16 %v2037, %v2036
        %v2146 = vpack.c.bf16 %v2039, %v2038
        %v2147 = vpack.c.bf16 %v2041, %v2040
        %v2148 = vpack.c.bf16 %v2043, %v2042
        %v2149 = vpack.c.bf16 %v2045, %v2044
        %v2150 = vpack.c.bf16 %v2047, %v2046
        %v2151 = vpack.c.bf16 %v2049, %v2048
        %v2152 = vpack.c.bf16 %v2051, %v2050
        %v2153 = vpack.c.bf16 %v2053, %v2052
        %v2154 = vpack.c.bf16 %v2055, %v2054
        %v2155 = vpack.c.bf16 %v2057, %v2056
        %v2156 = vpack.c.bf16 %v2059, %v2058
        %v2157 = vpack.c.bf16 %v2061, %v2060
        %v2158 = vpack.c.bf16 %v2063, %v2062
        %v2159 = vpack.c.bf16 %v2065, %v2064
        %v2160 = vpack.c.bf16 %v2067, %v2066
        %v2161 = vpack.c.bf16 %v2069, %v2068
        %v2162 = vpack.c.bf16 %v2071, %v2070
        %v2163 = vpack.c.bf16 %v2073, %v2072
        %v2164 = vpack.c.bf16 %v2075, %v2074
        %v2165 = vpack.c.bf16 %v2077, %v2076
        %v2166 = vpack.c.bf16 %v2079, %v2078
        %v2167 = vpack.c.bf16 %v2081, %v2080
        %v2168 = vpack.c.bf16 %v2083, %v2082
        %v2169 = vpack.c.bf16 %v2085, %v2084
        %v2170 = vpack.c.bf16 %v2087, %v2086
        %v2171 = vpack.c.bf16 %v2089, %v2088
        %v2172 = vpack.c.bf16 %v2091, %v2090
        %v2173 = vpack.c.bf16 %v2093, %v2092
        %v2174 = vpack.c.bf16 %v2095, %v2094
        %v2175 = vpack.c.bf16 %v2097, %v2096
        %v2176 = vpack.c.bf16 %v2099, %v2098
        %v2177 = vpack.c.bf16 %v2101, %v2100
        %v2178 = vpack.c.bf16 %v2103, %v2102
        %v2179 = vpack.c.bf16 %v2105, %v2104
        %v2180 = vpack.c.bf16 %v2107, %v2106
        %v2181 = vpack.c.bf16 %v2109, %v2108
        %v2182 = vpack.c.bf16 %v2111, %v2110
        %v2183 = vpack.c.bf16 %v2113, %v2112
        %v2184 = vpack.c.bf16 %v2115, %v2114
        %v2185 = vpack.c.bf16 %v2117, %v2116
        %v2186 = vpack.c.bf16 %v2119, %v2118
        %v2187 = vpack.c.bf16 %v2121, %v2120
        %v2188 = vpack.c.bf16 %v2123, %v2122
        %v2189 = vpack.c.bf16 %v2125, %v2124
        %v2254 = vunpack.c.l.b16 %v2126
        %v2255 = vunpack.c.h.b16 %v2126
        %v2256 = vunpack.c.l.b16 %v2127
        %v2257 = vunpack.c.h.b16 %v2127
        %v2258 = vunpack.c.l.b16 %v2128
        %v2259 = vunpack.c.h.b16 %v2128
        %v2260 = vunpack.c.l.b16 %v2129
        %v2261 = vunpack.c.h.b16 %v2129
        %v2262 = vunpack.c.l.b16 %v2130
        %v2263 = vunpack.c.h.b16 %v2130
        %v2264 = vunpack.c.l.b16 %v2131
        %v2265 = vunpack.c.h.b16 %v2131
        %v2266 = vunpack.c.l.b16 %v2132
        %v2267 = vunpack.c.h.b16 %v2132
        %v2268 = vunpack.c.l.b16 %v2133
        %v2269 = vunpack.c.h.b16 %v2133
        %v2270 = vunpack.c.l.b16 %v2134
        %v2271 = vunpack.c.h.b16 %v2134
        %v2272 = vunpack.c.l.b16 %v2135
        %v2273 = vunpack.c.h.b16 %v2135
        %v2274 = vunpack.c.l.b16 %v2136
        %v2275 = vunpack.c.h.b16 %v2136
        %v2276 = vunpack.c.l.b16 %v2137
        %v2277 = vunpack.c.h.b16 %v2137
        %v2278 = vunpack.c.l.b16 %v2138
        %v2279 = vunpack.c.h.b16 %v2138
        %v2280 = vunpack.c.l.b16 %v2139
        %v2281 = vunpack.c.h.b16 %v2139
        %v2282 = vunpack.c.l.b16 %v2140
        %v2283 = vunpack.c.h.b16 %v2140
        %v2284 = vunpack.c.l.b16 %v2141
        %v2285 = vunpack.c.h.b16 %v2141
        %v2286 = vunpack.c.l.b16 %v2142
        %v2287 = vunpack.c.h.b16 %v2142
        %v2288 = vunpack.c.l.b16 %v2143
        %v2289 = vunpack.c.h.b16 %v2143
        %v2290 = vunpack.c.l.b16 %v2144
        %v2291 = vunpack.c.h.b16 %v2144
        %v2292 = vunpack.c.l.b16 %v2145
        %v2293 = vunpack.c.h.b16 %v2145
        %v2294 = vunpack.c.l.b16 %v2146
        %v2295 = vunpack.c.h.b16 %v2146
        %v2296 = vunpack.c.l.b16 %v2147
        %v2297 = vunpack.c.h.b16 %v2147
        %v2298 = vunpack.c.l.b16 %v2148
        %v2299 = vunpack.c.h.b16 %v2148
        %v2300 = vunpack.c.l.b16 %v2149
        %v2301 = vunpack.c.h.b16 %v2149
        %v2302 = vunpack.c.l.b16 %v2150
        %v2303 = vunpack.c.h.b16 %v2150
        %v2304 = vunpack.c.l.b16 %v2151
        %v2305 = vunpack.c.h.b16 %v2151
        %v2306 = vunpack.c.l.b16 %v2152
        %v2307 = vunpack.c.h.b16 %v2152
        %v2308 = vunpack.c.l.b16 %v2153
        %v2309 = vunpack.c.h.b16 %v2153
        %v2310 = vunpack.c.l.b16 %v2154
        %v2311 = vunpack.c.h.b16 %v2154
        %v2312 = vunpack.c.l.b16 %v2155
        %v2313 = vunpack.c.h.b16 %v2155
        %v2314 = vunpack.c.l.b16 %v2156
        %v2315 = vunpack.c.h.b16 %v2156
        %v2316 = vunpack.c.l.b16 %v2157
        %v2317 = vunpack.c.h.b16 %v2157
        %v2318 = vunpack.c.l.b16 %v2158
        %v2319 = vunpack.c.h.b16 %v2158
        %v2320 = vunpack.c.l.b16 %v2159
        %v2321 = vunpack.c.h.b16 %v2159
        %v2322 = vunpack.c.l.b16 %v2160
        %v2323 = vunpack.c.h.b16 %v2160
        %v2324 = vunpack.c.l.b16 %v2161
        %v2325 = vunpack.c.h.b16 %v2161
        %v2326 = vunpack.c.l.b16 %v2162
        %v2327 = vunpack.c.h.b16 %v2162
        %v2328 = vunpack.c.l.b16 %v2163
        %v2329 = vunpack.c.h.b16 %v2163
        %v2330 = vunpack.c.l.b16 %v2164
        %v2331 = vunpack.c.h.b16 %v2164
        %v2332 = vunpack.c.l.b16 %v2165
        %v2333 = vunpack.c.h.b16 %v2165
        %v2334 = vunpack.c.l.b16 %v2166
        %v2335 = vunpack.c.h.b16 %v2166
        %v2336 = vunpack.c.l.b16 %v2167
        %v2337 = vunpack.c.h.b16 %v2167
        %v2338 = vunpack.c.l.b16 %v2168
        %v2339 = vunpack.c.h.b16 %v2168
        %v2340 = vunpack.c.l.b16 %v2169
        %v2341 = vunpack.c.h.b16 %v2169
        %v2342 = vunpack.c.l.b16 %v2170
        %v2343 = vunpack.c.h.b16 %v2170
        %v2344 = vunpack.c.l.b16 %v2171
        %v2345 = vunpack.c.h.b16 %v2171
        %v2346 = vunpack.c.l.b16 %v2172
        %v2347 = vunpack.c.h.b16 %v2172
        %v2348 = vunpack.c.l.b16 %v2173
        %v2349 = vunpack.c.h.b16 %v2173
        %v2350 = vunpack.c.l.b16 %v2174
        %v2351 = vunpack.c.h.b16 %v2174
        %v2352 = vunpack.c.l.b16 %v2175
        %v2353 = vunpack.c.h.b16 %v2175
        %v2354 = vunpack.c.l.b16 %v2176
        %v2355 = vunpack.c.h.b16 %v2176
        %v2356 = vunpack.c.l.b16 %v2177
        %v2357 = vunpack.c.h.b16 %v2177
        %v2358 = vunpack.c.l.b16 %v2178
        %v2359 = vunpack.c.h.b16 %v2178
        %v2360 = vunpack.c.l.b16 %v2179
        %v2361 = vunpack.c.h.b16 %v2179
        %v2362 = vunpack.c.l.b16 %v2180
        %v2363 = vunpack.c.h.b16 %v2180
        %v2364 = vunpack.c.l.b16 %v2181
        %v2365 = vunpack.c.h.b16 %v2181
        %v2366 = vunpack.c.l.b16 %v2182
        %v2367 = vunpack.c.h.b16 %v2182
        %v2368 = vunpack.c.l.b16 %v2183
        %v2369 = vunpack.c.h.b16 %v2183
        %v2370 = vunpack.c.l.b16 %v2184
        %v2371 = vunpack.c.h.b16 %v2184
        %v2372 = vunpack.c.l.b16 %v2185
        %v2373 = vunpack.c.h.b16 %v2185
        %v2374 = vunpack.c.l.b16 %v2186
        %v2375 = vunpack.c.h.b16 %v2186
        %v2376 = vunpack.c.l.b16 %v2187
        %v2377 = vunpack.c.h.b16 %v2187
        %v2378 = vunpack.c.l.b16 %v2188
        %v2379 = vunpack.c.h.b16 %v2188
        %v2380 = vunpack.c.l.b16 %v2189
        %v2381 = vunpack.c.h.b16 %v2189
        %v2382 = vpack.c.b16 %v2254, %v2254
        %v2383 = vpack.c.b16 %v2255, %v2255
        %v2384 = vpack.c.b16 %v2256, %v2256
        %v2385 = vpack.c.b16 %v2257, %v2257
        %v2386 = vpack.c.b16 %v2258, %v2258
        %v2387 = vpack.c.b16 %v2259, %v2259
        %v2388 = vpack.c.b16 %v2260, %v2260
        %v2389 = vpack.c.b16 %v2261, %v2261
        %v2390 = vpack.c.b16 %v2262, %v2262
        %v2391 = vpack.c.b16 %v2263, %v2263
        %v2392 = vpack.c.b16 %v2264, %v2264
        %v2393 = vpack.c.b16 %v2265, %v2265
        %v2394 = vpack.c.b16 %v2266, %v2266
        %v2395 = vpack.c.b16 %v2267, %v2267
        %v2396 = vpack.c.b16 %v2268, %v2268
        %v2397 = vpack.c.b16 %v2269, %v2269
        %v2398 = vpack.c.b16 %v2270, %v2270
        %v2399 = vpack.c.b16 %v2271, %v2271
        %v2400 = vpack.c.b16 %v2272, %v2272
        %v2401 = vpack.c.b16 %v2273, %v2273
        %v2402 = vpack.c.b16 %v2274, %v2274
        %v2403 = vpack.c.b16 %v2275, %v2275
        %v2404 = vpack.c.b16 %v2276, %v2276
        %v2405 = vpack.c.b16 %v2277, %v2277
        %v2406 = vpack.c.b16 %v2278, %v2278
        %v2407 = vpack.c.b16 %v2279, %v2279
        %v2408 = vpack.c.b16 %v2280, %v2280
        %v2409 = vpack.c.b16 %v2281, %v2281
        %v2410 = vpack.c.b16 %v2282, %v2282
        %v2411 = vpack.c.b16 %v2283, %v2283
        %v2412 = vpack.c.b16 %v2284, %v2284
        %v2413 = vpack.c.b16 %v2285, %v2285
        %v2414 = vpack.c.b16 %v2286, %v2286
        %v2415 = vpack.c.b16 %v2287, %v2287
        %v2416 = vpack.c.b16 %v2288, %v2288
        %v2417 = vpack.c.b16 %v2289, %v2289
        %v2418 = vpack.c.b16 %v2290, %v2290
        %v2419 = vpack.c.b16 %v2291, %v2291
        %v2420 = vpack.c.b16 %v2292, %v2292
        %v2421 = vpack.c.b16 %v2293, %v2293
        %v2422 = vpack.c.b16 %v2294, %v2294
        %v2423 = vpack.c.b16 %v2295, %v2295
        %v2424 = vpack.c.b16 %v2296, %v2296
        %v2425 = vpack.c.b16 %v2297, %v2297
        %v2426 = vpack.c.b16 %v2298, %v2298
        %v2427 = vpack.c.b16 %v2299, %v2299
        %v2428 = vpack.c.b16 %v2300, %v2300
        %v2429 = vpack.c.b16 %v2301, %v2301
        %v2430 = vpack.c.b16 %v2302, %v2302
        %v2431 = vpack.c.b16 %v2303, %v2303
        %v2432 = vpack.c.b16 %v2304, %v2304
        %v2433 = vpack.c.b16 %v2305, %v2305
        %v2434 = vpack.c.b16 %v2306, %v2306
        %v2435 = vpack.c.b16 %v2307, %v2307
        %v2436 = vpack.c.b16 %v2308, %v2308
        %v2437 = vpack.c.b16 %v2309, %v2309
        %v2438 = vpack.c.b16 %v2310, %v2310
        %v2439 = vpack.c.b16 %v2311, %v2311
        %v2440 = vpack.c.b16 %v2312, %v2312
        %v2441 = vpack.c.b16 %v2313, %v2313
        %v2442 = vpack.c.b16 %v2314, %v2314
        %v2443 = vpack.c.b16 %v2315, %v2315
        %v2444 = vpack.c.b16 %v2316, %v2316
        %v2445 = vpack.c.b16 %v2317, %v2317
        %v2446 = vpack.c.b16 %v2318, %v2318
        %v2447 = vpack.c.b16 %v2319, %v2319
        %v2448 = vpack.c.b16 %v2320, %v2320
        %v2449 = vpack.c.b16 %v2321, %v2321
        %v2450 = vpack.c.b16 %v2322, %v2322
        %v2451 = vpack.c.b16 %v2323, %v2323
        %v2452 = vpack.c.b16 %v2324, %v2324
        %v2453 = vpack.c.b16 %v2325, %v2325
        %v2454 = vpack.c.b16 %v2326, %v2326
        %v2455 = vpack.c.b16 %v2327, %v2327
        %v2456 = vpack.c.b16 %v2328, %v2328
        %v2457 = vpack.c.b16 %v2329, %v2329
        %v2458 = vpack.c.b16 %v2330, %v2330
        %v2459 = vpack.c.b16 %v2331, %v2331
        %v2460 = vpack.c.b16 %v2332, %v2332
        %v2461 = vpack.c.b16 %v2333, %v2333
        %v2462 = vpack.c.b16 %v2334, %v2334
        %v2463 = vpack.c.b16 %v2335, %v2335
        %v2464 = vpack.c.b16 %v2336, %v2336
        %v2465 = vpack.c.b16 %v2337, %v2337
        %v2466 = vpack.c.b16 %v2338, %v2338
        %v2467 = vpack.c.b16 %v2339, %v2339
        %v2468 = vpack.c.b16 %v2340, %v2340
        %v2469 = vpack.c.b16 %v2341, %v2341
        %v2470 = vpack.c.b16 %v2342, %v2342
        %v2471 = vpack.c.b16 %v2343, %v2343
        %v2472 = vpack.c.b16 %v2344, %v2344
        %v2473 = vpack.c.b16 %v2345, %v2345
        %v2474 = vpack.c.b16 %v2346, %v2346
        %v2475 = vpack.c.b16 %v2347, %v2347
        %v2476 = vpack.c.b16 %v2348, %v2348
        %v2477 = vpack.c.b16 %v2349, %v2349
        %v2478 = vpack.c.b16 %v2350, %v2350
        %v2479 = vpack.c.b16 %v2351, %v2351
        %v2480 = vpack.c.b16 %v2352, %v2352
        %v2481 = vpack.c.b16 %v2353, %v2353
        %v2482 = vpack.c.b16 %v2354, %v2354
        %v2483 = vpack.c.b16 %v2355, %v2355
        %v2484 = vpack.c.b16 %v2356, %v2356
        %v2485 = vpack.c.b16 %v2357, %v2357
        %v2486 = vpack.c.b16 %v2358, %v2358
        %v2487 = vpack.c.b16 %v2359, %v2359
        %v2488 = vpack.c.b16 %v2360, %v2360
        %v2489 = vpack.c.b16 %v2361, %v2361
        %v2490 = vpack.c.b16 %v2362, %v2362
        %v2491 = vpack.c.b16 %v2363, %v2363
        %v2492 = vpack.c.b16 %v2364, %v2364
        %v2493 = vpack.c.b16 %v2365, %v2365
        %v2494 = vpack.c.b16 %v2366, %v2366
        %v2495 = vpack.c.b16 %v2367, %v2367
        %v2496 = vpack.c.b16 %v2368, %v2368
        %v2497 = vpack.c.b16 %v2369, %v2369
        %v2498 = vpack.c.b16 %v2370, %v2370
        %v2499 = vpack.c.b16 %v2371, %v2371
        %v2500 = vpack.c.b16 %v2372, %v2372
        %v2501 = vpack.c.b16 %v2373, %v2373
        %v2502 = vpack.c.b16 %v2374, %v2374
        %v2503 = vpack.c.b16 %v2375, %v2375
        %v2504 = vpack.c.b16 %v2376, %v2376
        %v2505 = vpack.c.b16 %v2377, %v2377
        %v2506 = vpack.c.b16 %v2378, %v2378
        %v2507 = vpack.c.b16 %v2379, %v2379
        %v2508 = vpack.c.b16 %v2380, %v2380
        %v2509 = vpack.c.b16 %v2381, %v2381
        %vm2638 = vcmask 519168
        %2639 = vst.msk [vmem:[%s284] sm:$0xf] %vm2638, %v2382
        %2640 = vst.msk [vmem:[%s284 + $0x4] sm:$0xf] %vm2638, %v2383
        %2641 = vst.msk [vmem:[%s284 + $0x8] sm:$0xf] %vm2638, %v2384
        %2642 = vst.msk [vmem:[%s284 + $0xc] sm:$0xf] %vm2638, %v2385
        %2643 = vst.msk [vmem:[%s284 + $0x10] sm:$0xf] %vm2638, %v2386
        %2644 = vst.msk [vmem:[%s284 + $0x14] sm:$0xf] %vm2638, %v2387
        %2645 = vst.msk [vmem:[%s284 + $0x18] sm:$0xf] %vm2638, %v2388
        %2646 = vst.msk [vmem:[%s284 + $0x1c] sm:$0xf] %vm2638, %v2389
        %2647 = vst.msk [vmem:[%s284 + $0x20] sm:$0xf] %vm2638, %v2390
        %2648 = vst.msk [vmem:[%s284 + $0x24] sm:$0xf] %vm2638, %v2391
        %2649 = vst.msk [vmem:[%s284 + $0x28] sm:$0xf] %vm2638, %v2392
        %2650 = vst.msk [vmem:[%s284 + $0x2c] sm:$0xf] %vm2638, %v2393
        %2651 = vst.msk [vmem:[%s284 + $0x30] sm:$0xf] %vm2638, %v2394
        %2652 = vst.msk [vmem:[%s284 + $0x34] sm:$0xf] %vm2638, %v2395
        %2653 = vst.msk [vmem:[%s284 + $0x38] sm:$0xf] %vm2638, %v2396
        %2654 = vst.msk [vmem:[%s284 + $0x3c] sm:$0xf] %vm2638, %v2397
        %2655 = vst.msk [vmem:[%s284 + $0x40] sm:$0xf] %vm2638, %v2398
        %2656 = vst.msk [vmem:[%s284 + $0x44] sm:$0xf] %vm2638, %v2399
        %2657 = vst.msk [vmem:[%s284 + $0x48] sm:$0xf] %vm2638, %v2400
        %2658 = vst.msk [vmem:[%s284 + $0x4c] sm:$0xf] %vm2638, %v2401
        %2659 = vst.msk [vmem:[%s284 + $0x50] sm:$0xf] %vm2638, %v2402
        %2660 = vst.msk [vmem:[%s284 + $0x54] sm:$0xf] %vm2638, %v2403
        %2661 = vst.msk [vmem:[%s284 + $0x58] sm:$0xf] %vm2638, %v2404
        %2662 = vst.msk [vmem:[%s284 + $0x5c] sm:$0xf] %vm2638, %v2405
        %2663 = vst.msk [vmem:[%s284 + $0x60] sm:$0xf] %vm2638, %v2406
        %2664 = vst.msk [vmem:[%s284 + $0x64] sm:$0xf] %vm2638, %v2407
        %2665 = vst.msk [vmem:[%s284 + $0x68] sm:$0xf] %vm2638, %v2408
        %2666 = vst.msk [vmem:[%s284 + $0x6c] sm:$0xf] %vm2638, %v2409
        %2667 = vst.msk [vmem:[%s284 + $0x70] sm:$0xf] %vm2638, %v2410
        %2668 = vst.msk [vmem:[%s284 + $0x74] sm:$0xf] %vm2638, %v2411
        %2669 = vst.msk [vmem:[%s284 + $0x78] sm:$0xf] %vm2638, %v2412
        %2670 = vst.msk [vmem:[%s284 + $0x7c] sm:$0xf] %vm2638, %v2413
        %2671 = vst.msk [vmem:[%s284 + $0x80] sm:$0xf] %vm2638, %v2414
        %2672 = vst.msk [vmem:[%s284 + $0x84] sm:$0xf] %vm2638, %v2415
        %2673 = vst.msk [vmem:[%s284 + $0x88] sm:$0xf] %vm2638, %v2416
        %2674 = vst.msk [vmem:[%s284 + $0x8c] sm:$0xf] %vm2638, %v2417
        %2675 = vst.msk [vmem:[%s284 + $0x90] sm:$0xf] %vm2638, %v2418
        %2676 = vst.msk [vmem:[%s284 + $0x94] sm:$0xf] %vm2638, %v2419
        %2677 = vst.msk [vmem:[%s284 + $0x98] sm:$0xf] %vm2638, %v2420
        %2678 = vst.msk [vmem:[%s284 + $0x9c] sm:$0xf] %vm2638, %v2421
        %2679 = vst.msk [vmem:[%s284 + $0xa0] sm:$0xf] %vm2638, %v2422
        %2680 = vst.msk [vmem:[%s284 + $0xa4] sm:$0xf] %vm2638, %v2423
        %2681 = vst.msk [vmem:[%s284 + $0xa8] sm:$0xf] %vm2638, %v2424
        %2682 = vst.msk [vmem:[%s284 + $0xac] sm:$0xf] %vm2638, %v2425
        %2683 = vst.msk [vmem:[%s284 + $0xb0] sm:$0xf] %vm2638, %v2426
        %2684 = vst.msk [vmem:[%s284 + $0xb4] sm:$0xf] %vm2638, %v2427
        %2685 = vst.msk [vmem:[%s284 + $0xb8] sm:$0xf] %vm2638, %v2428
        %2686 = vst.msk [vmem:[%s284 + $0xbc] sm:$0xf] %vm2638, %v2429
        %2687 = vst.msk [vmem:[%s284 + $0xc0] sm:$0xf] %vm2638, %v2430
        %2688 = vst.msk [vmem:[%s284 + $0xc4] sm:$0xf] %vm2638, %v2431
        %2689 = vst.msk [vmem:[%s284 + $0xc8] sm:$0xf] %vm2638, %v2432
        %2690 = vst.msk [vmem:[%s284 + $0xcc] sm:$0xf] %vm2638, %v2433
        %2691 = vst.msk [vmem:[%s284 + $0xd0] sm:$0xf] %vm2638, %v2434
        %2692 = vst.msk [vmem:[%s284 + $0xd4] sm:$0xf] %vm2638, %v2435
        %2693 = vst.msk [vmem:[%s284 + $0xd8] sm:$0xf] %vm2638, %v2436
        %2694 = vst.msk [vmem:[%s284 + $0xdc] sm:$0xf] %vm2638, %v2437
        %2695 = vst.msk [vmem:[%s284 + $0xe0] sm:$0xf] %vm2638, %v2438
        %2696 = vst.msk [vmem:[%s284 + $0xe4] sm:$0xf] %vm2638, %v2439
        %2697 = vst.msk [vmem:[%s284 + $0xe8] sm:$0xf] %vm2638, %v2440
        %2698 = vst.msk [vmem:[%s284 + $0xec] sm:$0xf] %vm2638, %v2441
        %2699 = vst.msk [vmem:[%s284 + $0xf0] sm:$0xf] %vm2638, %v2442
        %2700 = vst.msk [vmem:[%s284 + $0xf4] sm:$0xf] %vm2638, %v2443
        %2701 = vst.msk [vmem:[%s284 + $0xf8] sm:$0xf] %vm2638, %v2444
        %2702 = vst.msk [vmem:[%s284 + $0xfc] sm:$0xf] %vm2638, %v2445
        %2703 = vst.msk [vmem:[%s284 + $0x100] sm:$0xf] %vm2638, %v2446
        %2704 = vst.msk [vmem:[%s284 + $0x104] sm:$0xf] %vm2638, %v2447
        %2705 = vst.msk [vmem:[%s284 + $0x108] sm:$0xf] %vm2638, %v2448
        %2706 = vst.msk [vmem:[%s284 + $0x10c] sm:$0xf] %vm2638, %v2449
        %2707 = vst.msk [vmem:[%s284 + $0x110] sm:$0xf] %vm2638, %v2450
        %2708 = vst.msk [vmem:[%s284 + $0x114] sm:$0xf] %vm2638, %v2451
        %2709 = vst.msk [vmem:[%s284 + $0x118] sm:$0xf] %vm2638, %v2452
        %2710 = vst.msk [vmem:[%s284 + $0x11c] sm:$0xf] %vm2638, %v2453
        %2711 = vst.msk [vmem:[%s284 + $0x120] sm:$0xf] %vm2638, %v2454
        %2712 = vst.msk [vmem:[%s284 + $0x124] sm:$0xf] %vm2638, %v2455
        %2713 = vst.msk [vmem:[%s284 + $0x128] sm:$0xf] %vm2638, %v2456
        %2714 = vst.msk [vmem:[%s284 + $0x12c] sm:$0xf] %vm2638, %v2457
        %2715 = vst.msk [vmem:[%s284 + $0x130] sm:$0xf] %vm2638, %v2458
        %2716 = vst.msk [vmem:[%s284 + $0x134] sm:$0xf] %vm2638, %v2459
        %2717 = vst.msk [vmem:[%s284 + $0x138] sm:$0xf] %vm2638, %v2460
        %2718 = vst.msk [vmem:[%s284 + $0x13c] sm:$0xf] %vm2638, %v2461
        %2719 = vst.msk [vmem:[%s284 + $0x140] sm:$0xf] %vm2638, %v2462
        %2720 = vst.msk [vmem:[%s284 + $0x144] sm:$0xf] %vm2638, %v2463
        %2721 = vst.msk [vmem:[%s284 + $0x148] sm:$0xf] %vm2638, %v2464
        %2722 = vst.msk [vmem:[%s284 + $0x14c] sm:$0xf] %vm2638, %v2465
        %2723 = vst.msk [vmem:[%s284 + $0x150] sm:$0xf] %vm2638, %v2466
        %2724 = vst.msk [vmem:[%s284 + $0x154] sm:$0xf] %vm2638, %v2467
        %2725 = vst.msk [vmem:[%s284 + $0x158] sm:$0xf] %vm2638, %v2468
        %2726 = vst.msk [vmem:[%s284 + $0x15c] sm:$0xf] %vm2638, %v2469
        %2727 = vst.msk [vmem:[%s284 + $0x160] sm:$0xf] %vm2638, %v2470
        %2728 = vst.msk [vmem:[%s284 + $0x164] sm:$0xf] %vm2638, %v2471
        %2729 = vst.msk [vmem:[%s284 + $0x168] sm:$0xf] %vm2638, %v2472
        %2730 = vst.msk [vmem:[%s284 + $0x16c] sm:$0xf] %vm2638, %v2473
        %2731 = vst.msk [vmem:[%s284 + $0x170] sm:$0xf] %vm2638, %v2474
        %2732 = vst.msk [vmem:[%s284 + $0x174] sm:$0xf] %vm2638, %v2475
        %2733 = vst.msk [vmem:[%s284 + $0x178] sm:$0xf] %vm2638, %v2476
        %2734 = vst.msk [vmem:[%s284 + $0x17c] sm:$0xf] %vm2638, %v2477
        %2735 = vst.msk [vmem:[%s284 + $0x180] sm:$0xf] %vm2638, %v2478
        %2736 = vst.msk [vmem:[%s284 + $0x184] sm:$0xf] %vm2638, %v2479
        %2737 = vst.msk [vmem:[%s284 + $0x188] sm:$0xf] %vm2638, %v2480
        %2738 = vst.msk [vmem:[%s284 + $0x18c] sm:$0xf] %vm2638, %v2481
        %2739 = vst.msk [vmem:[%s284 + $0x190] sm:$0xf] %vm2638, %v2482
        %2740 = vst.msk [vmem:[%s284 + $0x194] sm:$0xf] %vm2638, %v2483
        %2741 = vst.msk [vmem:[%s284 + $0x198] sm:$0xf] %vm2638, %v2484
        %2742 = vst.msk [vmem:[%s284 + $0x19c] sm:$0xf] %vm2638, %v2485
        %2743 = vst.msk [vmem:[%s284 + $0x1a0] sm:$0xf] %vm2638, %v2486
        %2744 = vst.msk [vmem:[%s284 + $0x1a4] sm:$0xf] %vm2638, %v2487
        %2745 = vst.msk [vmem:[%s284 + $0x1a8] sm:$0xf] %vm2638, %v2488
        %2746 = vst.msk [vmem:[%s284 + $0x1ac] sm:$0xf] %vm2638, %v2489
        %2747 = vst.msk [vmem:[%s284 + $0x1b0] sm:$0xf] %vm2638, %v2490
        %2748 = vst.msk [vmem:[%s284 + $0x1b4] sm:$0xf] %vm2638, %v2491
        %2749 = vst.msk [vmem:[%s284 + $0x1b8] sm:$0xf] %vm2638, %v2492
        %2750 = vst.msk [vmem:[%s284 + $0x1bc] sm:$0xf] %vm2638, %v2493
        %2751 = vst.msk [vmem:[%s284 + $0x1c0] sm:$0xf] %vm2638, %v2494
        %2752 = vst.msk [vmem:[%s284 + $0x1c4] sm:$0xf] %vm2638, %v2495
        %2753 = vst.msk [vmem:[%s284 + $0x1c8] sm:$0xf] %vm2638, %v2496
        %2754 = vst.msk [vmem:[%s284 + $0x1cc] sm:$0xf] %vm2638, %v2497
        %2755 = vst.msk [vmem:[%s284 + $0x1d0] sm:$0xf] %vm2638, %v2498
        %2756 = vst.msk [vmem:[%s284 + $0x1d4] sm:$0xf] %vm2638, %v2499
        %2757 = vst.msk [vmem:[%s284 + $0x1d8] sm:$0xf] %vm2638, %v2500
        %2758 = vst.msk [vmem:[%s284 + $0x1dc] sm:$0xf] %vm2638, %v2501
        %2759 = vst.msk [vmem:[%s284 + $0x1e0] sm:$0xf] %vm2638, %v2502
        %2760 = vst.msk [vmem:[%s284 + $0x1e4] sm:$0xf] %vm2638, %v2503
        %2761 = vst.msk [vmem:[%s284 + $0x1e8] sm:$0xf] %vm2638, %v2504
        %2762 = vst.msk [vmem:[%s284 + $0x1ec] sm:$0xf] %vm2638, %v2505
        %2763 = vst.msk [vmem:[%s284 + $0x1f0] sm:$0xf] %vm2638, %v2506
        %2764 = vst.msk [vmem:[%s284 + $0x1f4] sm:$0xf] %vm2638, %v2507
        %2765 = vst.msk [vmem:[%s284 + $0x1f8] sm:$0xf] %vm2638, %v2508
        %2766 = vst.msk [vmem:[%s284 + $0x1fc] sm:$0xf] %vm2638, %v2509
        %s2767 = smul.u32 128, %s22
        %p2768 = scmp.lt.s32.totalorder %s2767, 255
        %s2769 = scalar_select %p2768, %s2767, 255
        %p2770 = scmp.lt.s32.totalorder %s23, 0
        %s2771 = scalar_select %p2770, %s23, 0
        %s2772 = sadd.s32 %s2771, %s2769
        %s2773 = smul.addr %s2772, 4
        %s2774 = scalar_lea.vmem %s4, %s2773
        // Predicated region
        $region41: #{tpu_custom_call.1} parent=35 // pred_check
          %p2775 = pneg %p154
        $region42: #{tpu_custom_call.1} parent=35 // pred_check_branch
          %2777 = sbr.rel (%p2775) target = $region44
        $region43: #{tpu_custom_call.1} parent=35 // pred_region
          %s2778 = smul.u32 128, %s22
        $region44: #{tpu_custom_call.1} parent=35 // pred_fallthru
          _
      $region36: #{tpu_custom_call.1} parent=5 // pred_fallthru
        _
      %p2779 = scmp.le.s32.totalorder 2, %s13
      // Predicated region
      $region45: #{tpu_custom_call.1} parent=5 // pred_check
        %p2780 = pneg %p2779
      $region46: #{tpu_custom_call.1} parent=5 // pred_check_branch
        %2782 = sbr.rel (%p2780) target = $region48
      $region47: #{tpu_custom_call.1} parent=5 // pred_region
        %s2783 = ssub.s32 %s13, 2
        // Predicated region
        $region49: #{tpu_custom_call.1} parent=47 // pred_check
          %p2784 = pneg %p160
        $region50: #{tpu_custom_call.1} parent=47 // pred_check_branch
          %2786 = sbr.rel (%p2784) target = $region52
        $region51: #{tpu_custom_call.1} parent=47 // pred_region
          %s2787 = smul.u32 128, %s24
          %p2788 = scmp.lt.s32.totalorder %s2787, 255
          %s2789 = scalar_select %p2788, %s2787, 255
          %p2790 = scmp.lt.s32.totalorder %s25, 0
          %s2791 = scalar_select %p2790, %s25, 0
          %s2792 = sadd.s32 %s2791, %s2789
          %s2793 = smul.addr %s2792, 4
          %s2794 = scalar_lea.vmem %s4, %s2793
        $region52: #{tpu_custom_call.1} parent=47 // pred_fallthru
          _
      $region48: #{tpu_custom_call.1} parent=5 // pred_fallthru
        _
    $region6: #{tpu_custom_call.1} parent=1 // loop_footer
      %s17 = sadd.s32 1, %s13
    $region7: #{tpu_custom_call.1} parent=1 // loop_footer_branch
      %12 = sbr.rel target = $region3
    $region8: #{tpu_custom_call.1} parent=1 // loop_exit
      _
    %2795 = vsyncpa [#allocation3], 1
    %s2796 = scalar_lea.sflag [#allocation3], 1
    %2797 = vsyncpa %s2796, 1

</llo_original>
